<compile_context>
chip_gen: v5e
topology: v5e:2x2
jax: 0.10.0
libtpu: 0.0.40
codegen_flags: <defaults>
</compile_context>

<pallas_src>
import functools
import math

import jax
import jax.numpy as jnp
from jax.experimental import pallas as pl
from jax.experimental.pallas import tpu as pltpu

# ---------------- synthetic ALBERT config (small) ----------------
VOCAB = 100      # vocab_size
E = 16           # embedding_size
H = 32           # hidden_size
NH = 4           # num_attention_heads
DH = H // NH     # head dim
INTER = 64       # intermediate_size
NLAYERS = 2      # num_hidden_layers (ALBERT shares one set of layer weights)
MAX_POS = 16
OUT_DIM = 3      # regression output_dim
EPS = 1e-12

BATCH = 2
SEQ = 8

_VMEM = pl.BlockSpec(memory_space=pltpu.MemorySpace.VMEM)

# ---------------- packed-parameter layout (static, module level) -------------
_PACK_LANES = 128
_PACK_ENTRIES = (
    ("emb_map_w", E, H), ("o_w", H, H), ("ffn_w", H, INTER),
    ("ffn_out_w", INTER, H), ("pool_w", H, H), ("fc_w", H, OUT_DIM),
    ("emb_ln_g", 1, E), ("emb_ln_b", 1, E), ("emb_map_b", 1, H),
    ("o_b", 1, H), ("attn_ln_g", 1, H), ("attn_ln_b", 1, H),
    ("ffn_b", 1, INTER), ("ffn_out_b", 1, H), ("ffn_ln_g", 1, H),
    ("ffn_ln_b", 1, H), ("pool_b", 1, H), ("fc_b", 1, OUT_DIM),
)
_PACK_LAYOUT = {}
_row = 0
for _name, _r, _c in _PACK_ENTRIES:
    _PACK_LAYOUT[_name] = (_row, _r, _c)
    _row += ((_r + 7) // 8) * 8          # every block starts sublane-aligned
_PACK_ROWS = ((_row + 7) // 8) * 8


def _pk(ref, name):
    """Static-slice read of one packed parameter block."""
    r0, nr, nc = _PACK_LAYOUT[name]
    return ref[r0:r0 + nr, 0:nc]


# ---------------- in-kernel helpers ----------------
def _layer_norm(x, g, b):
    mean = jnp.mean(x, axis=-1, keepdims=True)
    var = jnp.mean((x - mean) ** 2, axis=-1, keepdims=True)
    return (x - mean) * jax.lax.rsqrt(var + EPS) * g + b


def _gelu_new(x):
    # gelu_new (tanh approximation) as used by ALBERT
    return 0.5 * x * (1.0 + jnp.tanh(0.7978845608028654 * (x + 0.044715 * x * x * x)))


# ---------------- the single fused kernel ----------------
def _albert_fused_kernel(emb_ref, bias_ref, wqkv_ref, bqkv_ref, pk_ref, out_ref,
                         *, batch, seq):
    G = batch * NH
    scale = 1.0 / math.sqrt(DH)

    # ---- embeddings tail: LayerNorm + embedding_hidden_mapping_in ----
    x = _layer_norm(emb_ref[...], _pk(pk_ref, "emb_ln_g"), _pk(pk_ref, "emb_ln_b"))
    h0 = jnp.dot(x, _pk(pk_ref, "emb_map_w"),
                 preferred_element_type=jnp.float32) + _pk(pk_ref, "emb_map_b")

    # ---- loop-invariant loads / broadcasts (hoisted out of the layer loop) ----
    bias_g = bias_ref[...]                                     # (G, 1, S) additive mask
    w_qkv_g = jnp.broadcast_to(wqkv_ref[...][None], (batch, NH, H, 3 * DH)
                               ).reshape(G, H, 3 * DH)         # major-dim ops only
    b_qkv_g = jnp.broadcast_to(bqkv_ref[...][None], (batch, NH, 1, 3 * DH)
                               ).reshape(G, 1, 3 * DH)
    w_o, b_o = _pk(pk_ref, "o_w"), _pk(pk_ref, "o_b")
    g_attn, be_attn = _pk(pk_ref, "attn_ln_g"), _pk(pk_ref, "attn_ln_b")
    w_ffn, b_ffn = _pk(pk_ref, "ffn_w"), _pk(pk_ref, "ffn_b")
    w_ffn_out, b_ffn_out = _pk(pk_ref, "ffn_out_w"), _pk(pk_ref, "ffn_out_b")
    g_ffn, be_ffn = _pk(pk_ref, "ffn_ln_g"), _pk(pk_ref, "ffn_ln_b")

    def layer_body(_, h):
        # broadcast hidden states to head-batched form (major-dim reshapes only)
        h_g = jnp.broadcast_to(h.reshape(batch, 1, seq, H),
                               (batch, NH, seq, H)).reshape(G, seq, H)
        # fused per-head Q/K/V projection: one batched dot_general, independent
        # MXU pushes that pipeline back-to-back (no dependent slicing between them)
        qkv = jax.lax.dot_general(h_g, w_qkv_g, (((2,), (1,)), ((0,), (0,))),
                                  preferred_element_type=jnp.float32) + b_qkv_g
        q = qkv[..., 0:DH]
        k = qkv[..., DH:2 * DH]
        v = qkv[..., 2 * DH:3 * DH]

        # batched scores / softmax / context over G = B*NH groups
        s = jax.lax.dot_general(q, k, (((2,), (2,)), ((0,), (0,))),
                                preferred_element_type=jnp.float32)
        s = s * scale + bias_g
        m = jnp.max(s, axis=-1, keepdims=True)
        p = jnp.exp(s - m)
        p = p * pl.reciprocal(jnp.sum(p, axis=-1, keepdims=True), approx=True)
        ctx_g = jax.lax.dot_general(p, v, (((2,), (1,)), ((0,), (0,))),
                                    preferred_element_type=jnp.float32)   # (G,S,DH)

        # reassemble (B*S, H) context fully in vregs: lane-concat heads,
        # sublane-concat batch blocks (no scratch, no masked stores)
        ctx = jnp.concatenate(
            [jnp.concatenate([ctx_g[b * NH + n] for n in range(NH)], axis=-1)
             for b in range(batch)], axis=0)                              # (B*S, H)

        attn_out = jnp.dot(ctx, w_o, preferred_element_type=jnp.float32) + b_o
        h = _layer_norm(attn_out + h, g_attn, be_attn)

        ffn = _gelu_new(jnp.dot(h, w_ffn, preferred_element_type=jnp.float32) + b_ffn)
        ffn_out = jnp.dot(ffn, w_ffn_out,
                          preferred_element_type=jnp.float32) + b_ffn_out
        return _layer_norm(ffn_out + h, g_ffn, be_ffn)

    # ALBERT: the SAME weights are applied NLAYERS times
    h = jax.lax.fori_loop(0, NLAYERS, layer_body, h0, unroll=True)

    # ---- pooler (tanh on first token) + regression head, first-token rows only
    cls = jnp.concatenate([h[b * seq:b * seq + 1, :] for b in range(batch)], axis=0)
    pooled = jnp.tanh(jnp.dot(cls, _pk(pk_ref, "pool_w"),
                              preferred_element_type=jnp.float32) + _pk(pk_ref, "pool_b"))
    # dropout: eval-mode identity (nn.Dropout is a no-op at inference)
    out_ref[...] = jnp.dot(pooled, _pk(pk_ref, "fc_w"),
                           preferred_element_type=jnp.float32) + _pk(pk_ref, "fc_b")


# ---------------- parameter init (deterministic) ----------------
def init_params(key):
    keys = jax.random.split(key, 32)
    ki = iter(keys)

    def w(shape, scale=0.02):
        return (scale * jax.random.normal(next(ki), shape)).astype(jnp.float32)

    def zeros(shape):
        return jnp.zeros(shape, jnp.float32)

    def ones(shape):
        return jnp.ones(shape, jnp.float32)

    layer = dict(
        q_w=w((H, H)), q_b=zeros((H,)),
        k_w=w((H, H)), k_b=zeros((H,)),
        v_w=w((H, H)), v_b=zeros((H,)),
        o_w=w((H, H)), o_b=zeros((H,)),
        attn_ln_g=ones((H,)), attn_ln_b=zeros((H,)),
        ffn_w=w((H, INTER)), ffn_b=zeros((INTER,)),
        ffn_out_w=w((INTER, H)), ffn_out_b=zeros((H,)),
        ffn_ln_g=ones((H,)), ffn_ln_b=zeros((H,)),
    )
    params = dict(
        word_emb=w((VOCAB, E)),
        pos_emb=w((MAX_POS, E)),
        tok_emb=w((2, E)),
        emb_ln_g=ones((E,)), emb_ln_b=zeros((E,)),
        emb_map_w=w((E, H)), emb_map_b=zeros((H,)),
        layer=layer,                       # single shared layer (ALBERT)
        pool_w=w((H, H)), pool_b=zeros((H,)),
        fc_w=w((H, OUT_DIM)), fc_b=zeros((OUT_DIM,)),
    )
    return params


# ---------------- one-time parameter preparation (hoisted out of forward) ----
def prepare_params(params):
    lw = params["layer"]

    # per-head fused QKV weights/bias laid out head-major: (NH, H, 3*DH)
    w_qkv_h = jnp.stack([
        jnp.concatenate([lw["q_w"][:, n * DH:(n + 1) * DH],
                         lw["k_w"][:, n * DH:(n + 1) * DH],
                         lw["v_w"][:, n * DH:(n + 1) * DH]], axis=1)
        for n in range(NH)], axis=0)
    b_qkv_h = jnp.stack([
        jnp.concatenate([lw["q_b"][n * DH:(n + 1) * DH],
                         lw["k_b"][n * DH:(n + 1) * DH],
                         lw["v_b"][n * DH:(n + 1) * DH]], axis=0).reshape(1, 3 * DH)
        for n in range(NH)], axis=0)

    flat = dict(
        emb_map_w=params["emb_map_w"], o_w=lw["o_w"], ffn_w=lw["ffn_w"],
        ffn_out_w=lw["ffn_out_w"], pool_w=params["pool_w"], fc_w=params["fc_w"],
        emb_ln_g=params["emb_ln_g"], emb_ln_b=params["emb_ln_b"],
        emb_map_b=params["emb_map_b"], o_b=lw["o_b"],
        attn_ln_g=lw["attn_ln_g"], attn_ln_b=lw["attn_ln_b"],
        ffn_b=lw["ffn_b"], ffn_out_b=lw["ffn_out_b"],
        ffn_ln_g=lw["ffn_ln_g"], ffn_ln_b=lw["ffn_ln_b"],
        pool_b=params["pool_b"], fc_b=params["fc_b"],
    )
    packed = jnp.zeros((_PACK_ROWS, _PACK_LANES), jnp.float32)
    for name, (r0, nr, nc) in _PACK_LAYOUT.items():
        packed = packed.at[r0:r0 + nr, 0:nc].set(flat[name].reshape(nr, nc))

    return dict(
        word_emb=params["word_emb"], pos_emb=params["pos_emb"],
        tok_emb=params["tok_emb"],
        w_qkv_h=w_qkv_h, b_qkv_h=b_qkv_h, packed=packed,
    )


# ---------------- forward ----------------
@jax.jit
def albert_regression_forward(prepped, input_ids, attention_mask):
    B, S = input_ids.shape

    # Embedding gather + sum stays as XLA glue (sub-(8,128) tile sized).
    # TODO(synk): at real albert-base sizes, fold this gather into the fused
    # kernel via scalar-prefetched token ids + an Element BlockSpec.
    we = jnp.take(prepped["word_emb"], input_ids, axis=0)          # (B, S, E)
    pe = prepped["pos_emb"][:S]                                    # (S, E)
    te = prepped["tok_emb"][0]                                     # (E,) token_type_ids == 0
    emb = (we + pe[None, :, :] + te[None, None, :]).reshape(B * S, E)

    # extended attention mask -> additive bias per (batch, head) group (runtime)
    bias = (1.0 - attention_mask.astype(jnp.float32)) * -10000.0   # (B, S)
    bias_g = jnp.repeat(bias, NH, axis=0)[:, None, :]              # (B*NH, 1, S)

    args = (emb, bias_g, prepped["w_qkv_h"], prepped["b_qkv_h"], prepped["packed"])

    return pl.pallas_call(
        functools.partial(_albert_fused_kernel, batch=B, seq=S),
        out_shape=jax.ShapeDtypeStruct((B, OUT_DIM), jnp.float32),
        in_specs=[_VMEM] * len(args),
        out_specs=_VMEM,
    )(*args)


# ---------------- main ----------------
if __name__ == "__main__":
    key = jax.random.PRNGKey(0)
    pkey, ikey = jax.random.split(key)

    params = init_params(pkey)
    prepped = prepare_params(params)       # one-time prep, outside the jitted forward

    input_ids = jax.random.randint(ikey, (BATCH, SEQ), 0, VOCAB, dtype=jnp.int32)
    attention_mask = jnp.array(
        [[1, 1, 1, 1, 1, 1, 1, 1],
         [1, 1, 1, 1, 1, 0, 0, 0]], dtype=jnp.int32)

    out = albert_regression_forward(prepped, input_ids, attention_mask)
    out = jax.block_until_ready(out)
    assert out.shape == (BATCH, OUT_DIM)
    assert jnp.all(jnp.isfinite(out))
    print("KERNEL_OK")
</pallas_src>

<mosaic_0001>
module attributes {stable_mosaic.version = 11 : i64} {
  func.func @_albert_fused_kernel(%arg0: memref<16x16xf32, #tpu.memory_space<vmem>>, %arg1: memref<8x1x8xf32, #tpu.memory_space<vmem>>, %arg2: memref<4x32x24xf32, #tpu.memory_space<vmem>>, %arg3: memref<4x1x24xf32, #tpu.memory_space<vmem>>, %arg4: memref<304x128xf32, #tpu.memory_space<vmem>>, %arg5: memref<2x3xf32, #tpu.memory_space<vmem>>) attributes {dimension_semantics = [], scalar_prefetch = 0 : i64, scratch_operands = 0 : i64, tpu.core_type = #tpu.core_type<tc>} {
    %c0 = arith.constant 0 : index
    %c0_0 = arith.constant 0 : index
    %0 = vector.load %arg0[%c0, %c0_0] : memref<16x16xf32, #tpu.memory_space<vmem>>, vector<16x16xf32>
    %c208 = arith.constant 208 : index
    %c0_1 = arith.constant 0 : index
    %1 = vector.load %arg4[%c208, %c0_1] : memref<304x128xf32, #tpu.memory_space<vmem>>, vector<1x16xf32>
    %c216 = arith.constant 216 : index
    %c0_2 = arith.constant 0 : index
    %2 = vector.load %arg4[%c216, %c0_2] : memref<304x128xf32, #tpu.memory_space<vmem>>, vector<1x16xf32>
    %cst = arith.constant dense<0.000000e+00> : vector<16xf32>
    %3 = vector.multi_reduction <add>, %0, %cst [1] : vector<16x16xf32> to vector<16xf32>
    %4 = vector.shape_cast %3 : vector<16xf32> to vector<16x1xf32>
    %cst_3 = arith.constant 1.600000e+01 : f32
    %5 = vector.broadcast %cst_3 : f32 to vector<16x1xf32>
    %6 = arith.divf %4, %5 : vector<16x1xf32>
    %7 = vector.broadcast %6 : vector<16x1xf32> to vector<16x16xf32>
    %8 = arith.subf %0, %7 : vector<16x16xf32>
    %9 = arith.mulf %8, %8 : vector<16x16xf32>
    %cst_4 = arith.constant dense<0.000000e+00> : vector<16xf32>
    %10 = vector.multi_reduction <add>, %9, %cst_4 [1] : vector<16x16xf32> to vector<16xf32>
    %11 = vector.shape_cast %10 : vector<16xf32> to vector<16x1xf32>
    %cst_5 = arith.constant 1.600000e+01 : f32
    %12 = vector.broadcast %cst_5 : f32 to vector<16x1xf32>
    %13 = arith.divf %11, %12 : vector<16x1xf32>
    %14 = vector.broadcast %6 : vector<16x1xf32> to vector<16x16xf32>
    %15 = arith.subf %0, %14 : vector<16x16xf32>
    %cst_6 = arith.constant 9.99999996E-13 : f32
    %16 = vector.broadcast %cst_6 : f32 to vector<16x1xf32>
    %17 = arith.addf %13, %16 : vector<16x1xf32>
    %18 = math.rsqrt %17 : vector<16x1xf32>
    %19 = vector.broadcast %18 : vector<16x1xf32> to vector<16x16xf32>
    %20 = arith.mulf %15, %19 : vector<16x16xf32>
    %21 = vector.broadcast %1 : vector<1x16xf32> to vector<16x16xf32>
    %22 = arith.mulf %20, %21 : vector<16x16xf32>
    %23 = vector.broadcast %2 : vector<1x16xf32> to vector<16x16xf32>
    %24 = arith.addf %22, %23 : vector<16x16xf32>
    %c0_7 = arith.constant 0 : index
    %c0_8 = arith.constant 0 : index
    %25 = vector.load %arg4[%c0_7, %c0_8] : memref<304x128xf32, #tpu.memory_space<vmem>>, vector<16x32xf32>
    %cst_9 = arith.constant dense<0.000000e+00> : vector<16x32xf32>
    %26 = tpu.matmul %24, %25, %cst_9 {dimension_numbers = #tpu.dot_dimension_numbers<[1], [0], [0], [1], [0, 0, 1, 1], [], []>} : vector<16x16xf32>, vector<16x32xf32>, vector<16x32xf32> -> vector<16x32xf32>
    %c224 = arith.constant 224 : index
    %c0_10 = arith.constant 0 : index
    %27 = vector.load %arg4[%c224, %c0_10] : memref<304x128xf32, #tpu.memory_space<vmem>>, vector<1x32xf32>
    %28 = vector.broadcast %27 : vector<1x32xf32> to vector<16x32xf32>
    %29 = arith.addf %26, %28 : vector<16x32xf32>
    %c0_11 = arith.constant 0 : index
    %c0_12 = arith.constant 0 : index
    %c0_13 = arith.constant 0 : index
    %30 = vector.load %arg1[%c0_11, %c0_12, %c0_13] : memref<8x1x8xf32, #tpu.memory_space<vmem>>, vector<8x1x8xf32>
    %c0_14 = arith.constant 0 : index
    %c0_15 = arith.constant 0 : index
    %c0_16 = arith.constant 0 : index
    %31 = vector.load %arg2[%c0_14, %c0_15, %c0_16] : memref<4x32x24xf32, #tpu.memory_space<vmem>>, vector<4x32x24xf32>
    %32 = vector.shape_cast %31 : vector<4x32x24xf32> to vector<1x4x32x24xf32>
    %33 = vector.shape_cast %32 : vector<1x4x32x24xf32> to vector<1x4x32x24xf32>
    %34 = vector.broadcast %33 : vector<1x4x32x24xf32> to vector<2x4x32x24xf32>
    %35 = vector.shape_cast %34 : vector<2x4x32x24xf32> to vector<8x32x24xf32>
    %c0_17 = arith.constant 0 : index
    %c0_18 = arith.constant 0 : index
    %c0_19 = arith.constant 0 : index
    %36 = vector.load %arg3[%c0_17, %c0_18, %c0_19] : memref<4x1x24xf32, #tpu.memory_space<vmem>>, vector<4x1x24xf32>
    %37 = vector.shape_cast %36 : vector<4x1x24xf32> to vector<1x4x1x24xf32>
    %38 = vector.shape_cast %37 : vector<1x4x1x24xf32> to vector<1x4x1x24xf32>
    %39 = vector.broadcast %38 : vector<1x4x1x24xf32> to vector<2x4x1x24xf32>
    %40 = vector.shape_cast %39 : vector<2x4x1x24xf32> to vector<8x1x24xf32>
    %c16 = arith.constant 16 : index
    %c0_20 = arith.constant 0 : index
    %41 = vector.load %arg4[%c16, %c0_20] : memref<304x128xf32, #tpu.memory_space<vmem>>, vector<32x32xf32>
    %c232 = arith.constant 232 : index
    %c0_21 = arith.constant 0 : index
    %42 = vector.load %arg4[%c232, %c0_21] : memref<304x128xf32, #tpu.memory_space<vmem>>, vector<1x32xf32>
    %c240 = arith.constant 240 : index
    %c0_22 = arith.constant 0 : index
    %43 = vector.load %arg4[%c240, %c0_22] : memref<304x128xf32, #tpu.memory_space<vmem>>, vector<1x32xf32>
    %c248 = arith.constant 248 : index
    %c0_23 = arith.constant 0 : index
    %44 = vector.load %arg4[%c248, %c0_23] : memref<304x128xf32, #tpu.memory_space<vmem>>, vector<1x32xf32>
    %c48 = arith.constant 48 : index
    %c0_24 = arith.constant 0 : index
    %45 = vector.load %arg4[%c48, %c0_24] : memref<304x128xf32, #tpu.memory_space<vmem>>, vector<32x64xf32>
    %c256 = arith.constant 256 : index
    %c0_25 = arith.constant 0 : index
    %46 = vector.load %arg4[%c256, %c0_25] : memref<304x128xf32, #tpu.memory_space<vmem>>, vector<1x64xf32>
    %c80 = arith.constant 80 : index
    %c0_26 = arith.constant 0 : index
    %47 = vector.load %arg4[%c80, %c0_26] : memref<304x128xf32, #tpu.memory_space<vmem>>, vector<64x32xf32>
    %c264 = arith.constant 264 : index
    %c0_27 = arith.constant 0 : index
    %48 = vector.load %arg4[%c264, %c0_27] : memref<304x128xf32, #tpu.memory_space<vmem>>, vector<1x32xf32>
    %c272 = arith.constant 272 : index
    %c0_28 = arith.constant 0 : index
    %49 = vector.load %arg4[%c272, %c0_28] : memref<304x128xf32, #tpu.memory_space<vmem>>, vector<1x32xf32>
    %c280 = arith.constant 280 : index
    %c0_29 = arith.constant 0 : index
    %50 = vector.load %arg4[%c280, %c0_29] : memref<304x128xf32, #tpu.memory_space<vmem>>, vector<1x32xf32>
    %c0_i32 = arith.constant 0 : i32
    %51 = vector.shape_cast %29 : vector<16x32xf32> to vector<2x1x8x32xf32>
    %52 = vector.shape_cast %51 : vector<2x1x8x32xf32> to vector<2x1x8x32xf32>
    %53 = vector.broadcast %52 : vector<2x1x8x32xf32> to vector<2x4x8x32xf32>
    %54 = vector.shape_cast %53 : vector<2x4x8x32xf32> to vector<8x8x32xf32>
    %cst_30 = arith.constant dense<0.000000e+00> : vector<8x8x24xf32>
    %55 = tpu.matmul %54, %35, %cst_30 {dimension_numbers = #tpu.dot_dimension_numbers<[2], [1], [1], [2], [0, 0, 0, 1, 1, 2], [0], [0]>} : vector<8x8x32xf32>, vector<8x32x24xf32>, vector<8x8x24xf32> -> vector<8x8x24xf32>
    %56 = vector.broadcast %40 : vector<8x1x24xf32> to vector<8x8x24xf32>
    %57 = arith.addf %55, %56 : vector<8x8x24xf32>
    %58 = vector.extract_strided_slice %57 {offsets = [0, 0, 0], sizes = [8, 8, 8], strides = [1, 1, 1]} : vector<8x8x24xf32> to vector<8x8x8xf32>
    %59 = vector.extract_strided_slice %57 {offsets = [0, 0, 8], sizes = [8, 8, 8], strides = [1, 1, 1]} : vector<8x8x24xf32> to vector<8x8x8xf32>
    %60 = vector.extract_strided_slice %57 {offsets = [0, 0, 16], sizes = [8, 8, 8], strides = [1, 1, 1]} : vector<8x8x24xf32> to vector<8x8x8xf32>
    %cst_31 = arith.constant dense<0.000000e+00> : vector<8x8x8xf32>
    %61 = tpu.matmul %58, %59, %cst_31 {dimension_numbers = #tpu.dot_dimension_numbers<[2], [2], [1], [1], [0, 0, 0, 1, 1, 1], [0], [0]>} : vector<8x8x8xf32>, vector<8x8x8xf32>, vector<8x8x8xf32> -> vector<8x8x8xf32>
    %cst_32 = arith.constant 0.353553385 : f32
    %62 = vector.broadcast %cst_32 : f32 to vector<8x8x8xf32>
    %63 = arith.mulf %61, %62 : vector<8x8x8xf32>
    %64 = vector.broadcast %30 : vector<8x1x8xf32> to vector<8x8x8xf32>
    %65 = arith.addf %63, %64 : vector<8x8x8xf32>
    %cst_33 = arith.constant dense<0xFF800000> : vector<8x8xf32>
    %66 = vector.multi_reduction <maximumf>, %65, %cst_33 [2] : vector<8x8x8xf32> to vector<8x8xf32>
    %67 = vector.shape_cast %66 : vector<8x8xf32> to vector<8x8x1xf32>
    %68 = vector.broadcast %67 : vector<8x8x1xf32> to vector<8x8x8xf32>
    %69 = arith.subf %65, %68 : vector<8x8x8xf32>
    %70 = math.exp %69 : vector<8x8x8xf32>
    %cst_34 = arith.constant dense<0.000000e+00> : vector<8x8xf32>
    %71 = vector.multi_reduction <add>, %70, %cst_34 [2] : vector<8x8x8xf32> to vector<8x8xf32>
    %72 = vector.shape_cast %71 : vector<8x8xf32> to vector<8x8x1xf32>
    %73 = tpu.reciprocal %72 {approx = true} : vector<8x8x1xf32> -> vector<8x8x1xf32>
    %74 = vector.broadcast %73 : vector<8x8x1xf32> to vector<8x8x8xf32>
    %75 = arith.mulf %70, %74 : vector<8x8x8xf32>
    %cst_35 = arith.constant dense<0.000000e+00> : vector<8x8x8xf32>
    %76 = tpu.matmul %75, %60, %cst_35 {dimension_numbers = #tpu.dot_dimension_numbers<[2], [1], [1], [2], [0, 0, 0, 1, 1, 2], [0], [0]>} : vector<8x8x8xf32>, vector<8x8x8xf32>, vector<8x8x8xf32> -> vector<8x8x8xf32>
    %77 = vector.extract_strided_slice %76 {offsets = [0, 0, 0], sizes = [1, 8, 8], strides = [1, 1, 1]} : vector<8x8x8xf32> to vector<1x8x8xf32>
    %78 = vector.shape_cast %77 : vector<1x8x8xf32> to vector<8x8xf32>
    %79 = vector.extract_strided_slice %76 {offsets = [1, 0, 0], sizes = [1, 8, 8], strides = [1, 1, 1]} : vector<8x8x8xf32> to vector<1x8x8xf32>
    %80 = vector.shape_cast %79 : vector<1x8x8xf32> to vector<8x8xf32>
    %81 = vector.extract_strided_slice %76 {offsets = [2, 0, 0], sizes = [1, 8, 8], strides = [1, 1, 1]} : vector<8x8x8xf32> to vector<1x8x8xf32>
    %82 = vector.shape_cast %81 : vector<1x8x8xf32> to vector<8x8xf32>
    %83 = vector.extract_strided_slice %76 {offsets = [3, 0, 0], sizes = [1, 8, 8], strides = [1, 1, 1]} : vector<8x8x8xf32> to vector<1x8x8xf32>
    %84 = vector.shape_cast %83 : vector<1x8x8xf32> to vector<8x8xf32>
    %85 = tpu.concatenate %78, %80, %82, %84 in 1 : vector<8x8xf32>, vector<8x8xf32>, vector<8x8xf32>, vector<8x8xf32> -> vector<8x32xf32>
    %86 = vector.extract_strided_slice %76 {offsets = [4, 0, 0], sizes = [1, 8, 8], strides = [1, 1, 1]} : vector<8x8x8xf32> to vector<1x8x8xf32>
    %87 = vector.shape_cast %86 : vector<1x8x8xf32> to vector<8x8xf32>
    %88 = vector.extract_strided_slice %76 {offsets = [5, 0, 0], sizes = [1, 8, 8], strides = [1, 1, 1]} : vector<8x8x8xf32> to vector<1x8x8xf32>
    %89 = vector.shape_cast %88 : vector<1x8x8xf32> to vector<8x8xf32>
    %90 = vector.extract_strided_slice %76 {offsets = [6, 0, 0], sizes = [1, 8, 8], strides = [1, 1, 1]} : vector<8x8x8xf32> to vector<1x8x8xf32>
    %91 = vector.shape_cast %90 : vector<1x8x8xf32> to vector<8x8xf32>
    %92 = vector.extract_strided_slice %76 {offsets = [7, 0, 0], sizes = [1, 8, 8], strides = [1, 1, 1]} : vector<8x8x8xf32> to vector<1x8x8xf32>
    %93 = vector.shape_cast %92 : vector<1x8x8xf32> to vector<8x8xf32>
    %94 = tpu.concatenate %87, %89, %91, %93 in 1 : vector<8x8xf32>, vector<8x8xf32>, vector<8x8xf32>, vector<8x8xf32> -> vector<8x32xf32>
    %95 = tpu.concatenate %85, %94 in 0 : vector<8x32xf32>, vector<8x32xf32> -> vector<16x32xf32>
    %cst_36 = arith.constant dense<0.000000e+00> : vector<16x32xf32>
    %96 = tpu.matmul %95, %41, %cst_36 {dimension_numbers = #tpu.dot_dimension_numbers<[1], [0], [0], [1], [0, 0, 1, 1], [], []>} : vector<16x32xf32>, vector<32x32xf32>, vector<16x32xf32> -> vector<16x32xf32>
    %97 = vector.broadcast %42 : vector<1x32xf32> to vector<16x32xf32>
    %98 = arith.addf %96, %97 : vector<16x32xf32>
    %99 = arith.addf %98, %29 : vector<16x32xf32>
    %cst_37 = arith.constant dense<0.000000e+00> : vector<16xf32>
    %100 = vector.multi_reduction <add>, %99, %cst_37 [1] : vector<16x32xf32> to vector<16xf32>
    %101 = vector.shape_cast %100 : vector<16xf32> to vector<16x1xf32>
    %cst_38 = arith.constant 3.200000e+01 : f32
    %102 = vector.broadcast %cst_38 : f32 to vector<16x1xf32>
    %103 = arith.divf %101, %102 : vector<16x1xf32>
    %104 = vector.broadcast %103 : vector<16x1xf32> to vector<16x32xf32>
    %105 = arith.subf %99, %104 : vector<16x32xf32>
    %106 = arith.mulf %105, %105 : vector<16x32xf32>
    %cst_39 = arith.constant dense<0.000000e+00> : vector<16xf32>
    %107 = vector.multi_reduction <add>, %106, %cst_39 [1] : vector<16x32xf32> to vector<16xf32>
    %108 = vector.shape_cast %107 : vector<16xf32> to vector<16x1xf32>
    %cst_40 = arith.constant 3.200000e+01 : f32
    %109 = vector.broadcast %cst_40 : f32 to vector<16x1xf32>
    %110 = arith.divf %108, %109 : vector<16x1xf32>
    %111 = vector.broadcast %103 : vector<16x1xf32> to vector<16x32xf32>
    %112 = arith.subf %99, %111 : vector<16x32xf32>
    %cst_41 = arith.constant 9.99999996E-13 : f32
    %113 = vector.broadcast %cst_41 : f32 to vector<16x1xf32>
    %114 = arith.addf %110, %113 : vector<16x1xf32>
    %115 = math.rsqrt %114 : vector<16x1xf32>
    %116 = vector.broadcast %115 : vector<16x1xf32> to vector<16x32xf32>
    %117 = arith.mulf %112, %116 : vector<16x32xf32>
    %118 = vector.broadcast %43 : vector<1x32xf32> to vector<16x32xf32>
    %119 = arith.mulf %117, %118 : vector<16x32xf32>
    %120 = vector.broadcast %44 : vector<1x32xf32> to vector<16x32xf32>
    %121 = arith.addf %119, %120 : vector<16x32xf32>
    %cst_42 = arith.constant dense<0.000000e+00> : vector<16x64xf32>
    %122 = tpu.matmul %121, %45, %cst_42 {dimension_numbers = #tpu.dot_dimension_numbers<[1], [0], [0], [1], [0, 0, 1, 1], [], []>} : vector<16x32xf32>, vector<32x64xf32>, vector<16x64xf32> -> vector<16x64xf32>
    %123 = vector.broadcast %46 : vector<1x64xf32> to vector<16x64xf32>
    %124 = arith.addf %122, %123 : vector<16x64xf32>
    %cst_43 = arith.constant 5.000000e-01 : f32
    %125 = vector.broadcast %cst_43 : f32 to vector<16x64xf32>
    %126 = arith.mulf %125, %124 : vector<16x64xf32>
    %cst_44 = arith.constant 4.471500e-02 : f32
    %127 = vector.broadcast %cst_44 : f32 to vector<16x64xf32>
    %128 = arith.mulf %127, %124 : vector<16x64xf32>
    %129 = arith.mulf %128, %124 : vector<16x64xf32>
    %130 = arith.mulf %129, %124 : vector<16x64xf32>
    %131 = arith.addf %124, %130 : vector<16x64xf32>
    %cst_45 = arith.constant 0.797884583 : f32
    %132 = vector.broadcast %cst_45 : f32 to vector<16x64xf32>
    %133 = arith.mulf %132, %131 : vector<16x64xf32>
    %134 = math.tanh %133 : vector<16x64xf32>
    %cst_46 = arith.constant 1.000000e+00 : f32
    %135 = vector.broadcast %cst_46 : f32 to vector<16x64xf32>
    %136 = arith.addf %135, %134 : vector<16x64xf32>
    %137 = arith.mulf %126, %136 : vector<16x64xf32>
    %cst_47 = arith.constant dense<0.000000e+00> : vector<16x32xf32>
    %138 = tpu.matmul %137, %47, %cst_47 {dimension_numbers = #tpu.dot_dimension_numbers<[1], [0], [0], [1], [0, 0, 1, 1], [], []>} : vector<16x64xf32>, vector<64x32xf32>, vector<16x32xf32> -> vector<16x32xf32>
    %139 = vector.broadcast %48 : vector<1x32xf32> to vector<16x32xf32>
    %140 = arith.addf %138, %139 : vector<16x32xf32>
    %141 = arith.addf %140, %121 : vector<16x32xf32>
    %cst_48 = arith.constant dense<0.000000e+00> : vector<16xf32>
    %142 = vector.multi_reduction <add>, %141, %cst_48 [1] : vector<16x32xf32> to vector<16xf32>
    %143 = vector.shape_cast %142 : vector<16xf32> to vector<16x1xf32>
    %cst_49 = arith.constant 3.200000e+01 : f32
    %144 = vector.broadcast %cst_49 : f32 to vector<16x1xf32>
    %145 = arith.divf %143, %144 : vector<16x1xf32>
    %146 = vector.broadcast %145 : vector<16x1xf32> to vector<16x32xf32>
    %147 = arith.subf %141, %146 : vector<16x32xf32>
    %148 = arith.mulf %147, %147 : vector<16x32xf32>
    %cst_50 = arith.constant dense<0.000000e+00> : vector<16xf32>
    %149 = vector.multi_reduction <add>, %148, %cst_50 [1] : vector<16x32xf32> to vector<16xf32>
    %150 = vector.shape_cast %149 : vector<16xf32> to vector<16x1xf32>
    %cst_51 = arith.constant 3.200000e+01 : f32
    %151 = vector.broadcast %cst_51 : f32 to vector<16x1xf32>
    %152 = arith.divf %150, %151 : vector<16x1xf32>
    %153 = vector.broadcast %145 : vector<16x1xf32> to vector<16x32xf32>
    %154 = arith.subf %141, %153 : vector<16x32xf32>
    %cst_52 = arith.constant 9.99999996E-13 : f32
    %155 = vector.broadcast %cst_52 : f32 to vector<16x1xf32>
    %156 = arith.addf %152, %155 : vector<16x1xf32>
    %157 = math.rsqrt %156 : vector<16x1xf32>
    %158 = vector.broadcast %157 : vector<16x1xf32> to vector<16x32xf32>
    %159 = arith.mulf %154, %158 : vector<16x32xf32>
    %160 = vector.broadcast %49 : vector<1x32xf32> to vector<16x32xf32>
    %161 = arith.mulf %159, %160 : vector<16x32xf32>
    %162 = vector.broadcast %50 : vector<1x32xf32> to vector<16x32xf32>
    %163 = arith.addf %161, %162 : vector<16x32xf32>
    %c1_i32 = arith.constant 1 : i32
    %164 = vector.shape_cast %163 : vector<16x32xf32> to vector<2x1x8x32xf32>
    %165 = vector.shape_cast %164 : vector<2x1x8x32xf32> to vector<2x1x8x32xf32>
    %166 = vector.broadcast %165 : vector<2x1x8x32xf32> to vector<2x4x8x32xf32>
    %167 = vector.shape_cast %166 : vector<2x4x8x32xf32> to vector<8x8x32xf32>
    %cst_53 = arith.constant dense<0.000000e+00> : vector<8x8x24xf32>
    %168 = tpu.matmul %167, %35, %cst_53 {dimension_numbers = #tpu.dot_dimension_numbers<[2], [1], [1], [2], [0, 0, 0, 1, 1, 2], [0], [0]>} : vector<8x8x32xf32>, vector<8x32x24xf32>, vector<8x8x24xf32> -> vector<8x8x24xf32>
    %169 = vector.broadcast %40 : vector<8x1x24xf32> to vector<8x8x24xf32>
    %170 = arith.addf %168, %169 : vector<8x8x24xf32>
    %171 = vector.extract_strided_slice %170 {offsets = [0, 0, 0], sizes = [8, 8, 8], strides = [1, 1, 1]} : vector<8x8x24xf32> to vector<8x8x8xf32>
    %172 = vector.extract_strided_slice %170 {offsets = [0, 0, 8], sizes = [8, 8, 8], strides = [1, 1, 1]} : vector<8x8x24xf32> to vector<8x8x8xf32>
    %173 = vector.extract_strided_slice %170 {offsets = [0, 0, 16], sizes = [8, 8, 8], strides = [1, 1, 1]} : vector<8x8x24xf32> to vector<8x8x8xf32>
    %cst_54 = arith.constant dense<0.000000e+00> : vector<8x8x8xf32>
    %174 = tpu.matmul %171, %172, %cst_54 {dimension_numbers = #tpu.dot_dimension_numbers<[2], [2], [1], [1], [0, 0, 0, 1, 1, 1], [0], [0]>} : vector<8x8x8xf32>, vector<8x8x8xf32>, vector<8x8x8xf32> -> vector<8x8x8xf32>
    %cst_55 = arith.constant 0.353553385 : f32
    %175 = vector.broadcast %cst_55 : f32 to vector<8x8x8xf32>
    %176 = arith.mulf %174, %175 : vector<8x8x8xf32>
    %177 = vector.broadcast %30 : vector<8x1x8xf32> to vector<8x8x8xf32>
    %178 = arith.addf %176, %177 : vector<8x8x8xf32>
    %cst_56 = arith.constant dense<0xFF800000> : vector<8x8xf32>
    %179 = vector.multi_reduction <maximumf>, %178, %cst_56 [2] : vector<8x8x8xf32> to vector<8x8xf32>
    %180 = vector.shape_cast %179 : vector<8x8xf32> to vector<8x8x1xf32>
    %181 = vector.broadcast %180 : vector<8x8x1xf32> to vector<8x8x8xf32>
    %182 = arith.subf %178, %181 : vector<8x8x8xf32>
    %183 = math.exp %182 : vector<8x8x8xf32>
    %cst_57 = arith.constant dense<0.000000e+00> : vector<8x8xf32>
    %184 = vector.multi_reduction <add>, %183, %cst_57 [2] : vector<8x8x8xf32> to vector<8x8xf32>
    %185 = vector.shape_cast %184 : vector<8x8xf32> to vector<8x8x1xf32>
    %186 = tpu.reciprocal %185 {approx = true} : vector<8x8x1xf32> -> vector<8x8x1xf32>
    %187 = vector.broadcast %186 : vector<8x8x1xf32> to vector<8x8x8xf32>
    %188 = arith.mulf %183, %187 : vector<8x8x8xf32>
    %cst_58 = arith.constant dense<0.000000e+00> : vector<8x8x8xf32>
    %189 = tpu.matmul %188, %173, %cst_58 {dimension_numbers = #tpu.dot_dimension_numbers<[2], [1], [1], [2], [0, 0, 0, 1, 1, 2], [0], [0]>} : vector<8x8x8xf32>, vector<8x8x8xf32>, vector<8x8x8xf32> -> vector<8x8x8xf32>
    %190 = vector.extract_strided_slice %189 {offsets = [0, 0, 0], sizes = [1, 8, 8], strides = [1, 1, 1]} : vector<8x8x8xf32> to vector<1x8x8xf32>
    %191 = vector.shape_cast %190 : vector<1x8x8xf32> to vector<8x8xf32>
    %192 = vector.extract_strided_slice %189 {offsets = [1, 0, 0], sizes = [1, 8, 8], strides = [1, 1, 1]} : vector<8x8x8xf32> to vector<1x8x8xf32>
    %193 = vector.shape_cast %192 : vector<1x8x8xf32> to vector<8x8xf32>
    %194 = vector.extract_strided_slice %189 {offsets = [2, 0, 0], sizes = [1, 8, 8], strides = [1, 1, 1]} : vector<8x8x8xf32> to vector<1x8x8xf32>
    %195 = vector.shape_cast %194 : vector<1x8x8xf32> to vector<8x8xf32>
    %196 = vector.extract_strided_slice %189 {offsets = [3, 0, 0], sizes = [1, 8, 8], strides = [1, 1, 1]} : vector<8x8x8xf32> to vector<1x8x8xf32>
    %197 = vector.shape_cast %196 : vector<1x8x8xf32> to vector<8x8xf32>
    %198 = tpu.concatenate %191, %193, %195, %197 in 1 : vector<8x8xf32>, vector<8x8xf32>, vector<8x8xf32>, vector<8x8xf32> -> vector<8x32xf32>
    %199 = vector.extract_strided_slice %189 {offsets = [4, 0, 0], sizes = [1, 8, 8], strides = [1, 1, 1]} : vector<8x8x8xf32> to vector<1x8x8xf32>
    %200 = vector.shape_cast %199 : vector<1x8x8xf32> to vector<8x8xf32>
    %201 = vector.extract_strided_slice %189 {offsets = [5, 0, 0], sizes = [1, 8, 8], strides = [1, 1, 1]} : vector<8x8x8xf32> to vector<1x8x8xf32>
    %202 = vector.shape_cast %201 : vector<1x8x8xf32> to vector<8x8xf32>
    %203 = vector.extract_strided_slice %189 {offsets = [6, 0, 0], sizes = [1, 8, 8], strides = [1, 1, 1]} : vector<8x8x8xf32> to vector<1x8x8xf32>
    %204 = vector.shape_cast %203 : vector<1x8x8xf32> to vector<8x8xf32>
    %205 = vector.extract_strided_slice %189 {offsets = [7, 0, 0], sizes = [1, 8, 8], strides = [1, 1, 1]} : vector<8x8x8xf32> to vector<1x8x8xf32>
    %206 = vector.shape_cast %205 : vector<1x8x8xf32> to vector<8x8xf32>
    %207 = tpu.concatenate %200, %202, %204, %206 in 1 : vector<8x8xf32>, vector<8x8xf32>, vector<8x8xf32>, vector<8x8xf32> -> vector<8x32xf32>
    %208 = tpu.concatenate %198, %207 in 0 : vector<8x32xf32>, vector<8x32xf32> -> vector<16x32xf32>
    %cst_59 = arith.constant dense<0.000000e+00> : vector<16x32xf32>
    %209 = tpu.matmul %208, %41, %cst_59 {dimension_numbers = #tpu.dot_dimension_numbers<[1], [0], [0], [1], [0, 0, 1, 1], [], []>} : vector<16x32xf32>, vector<32x32xf32>, vector<16x32xf32> -> vector<16x32xf32>
    %210 = vector.broadcast %42 : vector<1x32xf32> to vector<16x32xf32>
    %211 = arith.addf %209, %210 : vector<16x32xf32>
    %212 = arith.addf %211, %163 : vector<16x32xf32>
    %cst_60 = arith.constant dense<0.000000e+00> : vector<16xf32>
    %213 = vector.multi_reduction <add>, %212, %cst_60 [1] : vector<16x32xf32> to vector<16xf32>
    %214 = vector.shape_cast %213 : vector<16xf32> to vector<16x1xf32>
    %cst_61 = arith.constant 3.200000e+01 : f32
    %215 = vector.broadcast %cst_61 : f32 to vector<16x1xf32>
    %216 = arith.divf %214, %215 : vector<16x1xf32>
    %217 = vector.broadcast %216 : vector<16x1xf32> to vector<16x32xf32>
    %218 = arith.subf %212, %217 : vector<16x32xf32>
    %219 = arith.mulf %218, %218 : vector<16x32xf32>
    %cst_62 = arith.constant dense<0.000000e+00> : vector<16xf32>
    %220 = vector.multi_reduction <add>, %219, %cst_62 [1] : vector<16x32xf32> to vector<16xf32>
    %221 = vector.shape_cast %220 : vector<16xf32> to vector<16x1xf32>
    %cst_63 = arith.constant 3.200000e+01 : f32
    %222 = vector.broadcast %cst_63 : f32 to vector<16x1xf32>
    %223 = arith.divf %221, %222 : vector<16x1xf32>
    %224 = vector.broadcast %216 : vector<16x1xf32> to vector<16x32xf32>
    %225 = arith.subf %212, %224 : vector<16x32xf32>
    %cst_64 = arith.constant 9.99999996E-13 : f32
    %226 = vector.broadcast %cst_64 : f32 to vector<16x1xf32>
    %227 = arith.addf %223, %226 : vector<16x1xf32>
    %228 = math.rsqrt %227 : vector<16x1xf32>
    %229 = vector.broadcast %228 : vector<16x1xf32> to vector<16x32xf32>
    %230 = arith.mulf %225, %229 : vector<16x32xf32>
    %231 = vector.broadcast %43 : vector<1x32xf32> to vector<16x32xf32>
    %232 = arith.mulf %230, %231 : vector<16x32xf32>
    %233 = vector.broadcast %44 : vector<1x32xf32> to vector<16x32xf32>
    %234 = arith.addf %232, %233 : vector<16x32xf32>
    %cst_65 = arith.constant dense<0.000000e+00> : vector<16x64xf32>
    %235 = tpu.matmul %234, %45, %cst_65 {dimension_numbers = #tpu.dot_dimension_numbers<[1], [0], [0], [1], [0, 0, 1, 1], [], []>} : vector<16x32xf32>, vector<32x64xf32>, vector<16x64xf32> -> vector<16x64xf32>
    %236 = vector.broadcast %46 : vector<1x64xf32> to vector<16x64xf32>
    %237 = arith.addf %235, %236 : vector<16x64xf32>
    %cst_66 = arith.constant 5.000000e-01 : f32
    %238 = vector.broadcast %cst_66 : f32 to vector<16x64xf32>
    %239 = arith.mulf %238, %237 : vector<16x64xf32>
    %cst_67 = arith.constant 4.471500e-02 : f32
    %240 = vector.broadcast %cst_67 : f32 to vector<16x64xf32>
    %241 = arith.mulf %240, %237 : vector<16x64xf32>
    %242 = arith.mulf %241, %237 : vector<16x64xf32>
    %243 = arith.mulf %242, %237 : vector<16x64xf32>
    %244 = arith.addf %237, %243 : vector<16x64xf32>
    %cst_68 = arith.constant 0.797884583 : f32
    %245 = vector.broadcast %cst_68 : f32 to vector<16x64xf32>
    %246 = arith.mulf %245, %244 : vector<16x64xf32>
    %247 = math.tanh %246 : vector<16x64xf32>
    %cst_69 = arith.constant 1.000000e+00 : f32
    %248 = vector.broadcast %cst_69 : f32 to vector<16x64xf32>
    %249 = arith.addf %248, %247 : vector<16x64xf32>
    %250 = arith.mulf %239, %249 : vector<16x64xf32>
    %cst_70 = arith.constant dense<0.000000e+00> : vector<16x32xf32>
    %251 = tpu.matmul %250, %47, %cst_70 {dimension_numbers = #tpu.dot_dimension_numbers<[1], [0], [0], [1], [0, 0, 1, 1], [], []>} : vector<16x64xf32>, vector<64x32xf32>, vector<16x32xf32> -> vector<16x32xf32>
    %252 = vector.broadcast %48 : vector<1x32xf32> to vector<16x32xf32>
    %253 = arith.addf %251, %252 : vector<16x32xf32>
    %254 = arith.addf %253, %234 : vector<16x32xf32>
    %cst_71 = arith.constant dense<0.000000e+00> : vector<16xf32>
    %255 = vector.multi_reduction <add>, %254, %cst_71 [1] : vector<16x32xf32> to vector<16xf32>
    %256 = vector.shape_cast %255 : vector<16xf32> to vector<16x1xf32>
    %cst_72 = arith.constant 3.200000e+01 : f32
    %257 = vector.broadcast %cst_72 : f32 to vector<16x1xf32>
    %258 = arith.divf %256, %257 : vector<16x1xf32>
    %259 = vector.broadcast %258 : vector<16x1xf32> to vector<16x32xf32>
    %260 = arith.subf %254, %259 : vector<16x32xf32>
    %261 = arith.mulf %260, %260 : vector<16x32xf32>
    %cst_73 = arith.constant dense<0.000000e+00> : vector<16xf32>
    %262 = vector.multi_reduction <add>, %261, %cst_73 [1] : vector<16x32xf32> to vector<16xf32>
    %263 = vector.shape_cast %262 : vector<16xf32> to vector<16x1xf32>
    %cst_74 = arith.constant 3.200000e+01 : f32
    %264 = vector.broadcast %cst_74 : f32 to vector<16x1xf32>
    %265 = arith.divf %263, %264 : vector<16x1xf32>
    %266 = vector.broadcast %258 : vector<16x1xf32> to vector<16x32xf32>
    %267 = arith.subf %254, %266 : vector<16x32xf32>
    %cst_75 = arith.constant 9.99999996E-13 : f32
    %268 = vector.broadcast %cst_75 : f32 to vector<16x1xf32>
    %269 = arith.addf %265, %268 : vector<16x1xf32>
    %270 = math.rsqrt %269 : vector<16x1xf32>
    %271 = vector.broadcast %270 : vector<16x1xf32> to vector<16x32xf32>
    %272 = arith.mulf %267, %271 : vector<16x32xf32>
    %273 = vector.broadcast %49 : vector<1x32xf32> to vector<16x32xf32>
    %274 = arith.mulf %272, %273 : vector<16x32xf32>
    %275 = vector.broadcast %50 : vector<1x32xf32> to vector<16x32xf32>
    %276 = arith.addf %274, %275 : vector<16x32xf32>
    %277 = vector.extract_strided_slice %276 {offsets = [0, 0], sizes = [1, 32], strides = [1, 1]} : vector<16x32xf32> to vector<1x32xf32>
    %278 = vector.extract_strided_slice %276 {offsets = [8, 0], sizes = [1, 32], strides = [1, 1]} : vector<16x32xf32> to vector<1x32xf32>
    %279 = tpu.concatenate %277, %278 in 0 : vector<1x32xf32>, vector<1x32xf32> -> vector<2x32xf32>
    %c144 = arith.constant 144 : index
    %c0_76 = arith.constant 0 : index
    %280 = vector.load %arg4[%c144, %c0_76] : memref<304x128xf32, #tpu.memory_space<vmem>>, vector<32x32xf32>
    %cst_77 = arith.constant dense<0.000000e+00> : vector<2x32xf32>
    %281 = tpu.matmul %279, %280, %cst_77 {dimension_numbers = #tpu.dot_dimension_numbers<[1], [0], [0], [1], [0, 0, 1, 1], [], []>} : vector<2x32xf32>, vector<32x32xf32>, vector<2x32xf32> -> vector<2x32xf32>
    %c288 = arith.constant 288 : index
    %c0_78 = arith.constant 0 : index
    %282 = vector.load %arg4[%c288, %c0_78] : memref<304x128xf32, #tpu.memory_space<vmem>>, vector<1x32xf32>
    %283 = vector.broadcast %282 : vector<1x32xf32> to vector<2x32xf32>
    %284 = arith.addf %281, %283 : vector<2x32xf32>
    %285 = math.tanh %284 : vector<2x32xf32>
    %c176 = arith.constant 176 : index
    %c0_79 = arith.constant 0 : index
    %286 = vector.load %arg4[%c176, %c0_79] : memref<304x128xf32, #tpu.memory_space<vmem>>, vector<32x3xf32>
    %cst_80 = arith.constant dense<0.000000e+00> : vector<2x3xf32>
    %287 = tpu.matmul %285, %286, %cst_80 {dimension_numbers = #tpu.dot_dimension_numbers<[1], [0], [0], [1], [0, 0, 1, 1], [], []>} : vector<2x32xf32>, vector<32x3xf32>, vector<2x3xf32> -> vector<2x3xf32>
    %c296 = arith.constant 296 : index
    %c0_81 = arith.constant 0 : index
    %288 = vector.load %arg4[%c296, %c0_81] : memref<304x128xf32, #tpu.memory_space<vmem>>, vector<1x3xf32>
    %289 = vector.broadcast %288 : vector<1x3xf32> to vector<2x3xf32>
    %290 = arith.addf %287, %289 : vector<2x3xf32>
    %c0_82 = arith.constant 0 : index
    %c0_83 = arith.constant 0 : index
    %291 = vector.load %arg5[%c0_82, %c0_83] : memref<2x3xf32, #tpu.memory_space<vmem>>, vector<2x3xf32>
    tpu.vector_store %arg5[%c0_82, %c0_83], %290 {strides = array<i32>} : memref<2x3xf32, #tpu.memory_space<vmem>>, vector<2x3xf32>,
    return
  }
}

</mosaic_0001>

<llo_original>
// kernel: albert_regression_forward.1
$region0: #{albert_regression_forward.1}
  #allocation0 [shape = 'u32[]', space=smem, size = 0x4, offset = 0x4, fixed_abs, tag = 'smem constant byte address 0x4 - core index']
  #allocation1 [shape = 'u32[72,128]{1,0:T(1,128)}', space=vmem, size = 0x9000, scoped, tag = 'internal scratch']
  %s0 = inlined_call_operand.vmem [shape: f32[16,16], index: 0, kind: input, shape index: {}]
  %s1 = inlined_call_operand.vmem [shape: f32[8,1,8], index: 1, kind: input, shape index: {}]
  %s2 = inlined_call_operand.vmem [shape: f32[4,32,24], index: 2, kind: input, shape index: {}]
  %s3 = inlined_call_operand.vmem [shape: f32[4,1,24], index: 3, kind: input, shape index: {}]
  %s4 = inlined_call_operand.vmem [shape: f32[304,128], index: 4, kind: input, shape index: {}]
  %s5 = inlined_call_operand.hbm [shape: f32[2,3], index: 5, kind: output, shape index: {}]
  %s6 = sld [smem:[#allocation0]]
  $region30: #{albert_regression_forward.1} parent=0
    _
  %s8 = ssub.s32 1, %s6
  %s9 = scalar_select 0, %s8, %s6
  $region1: #{albert_regression_forward.1} parent=0
    #allocation2 [shape = 'u8[1024]{0}', space=vmem, size = 0x400, scoped, tag = 'output window, operand 0, single buffered']
    #allocation3 [shape = 's32[1]{0}', space=sflag, size = 0x4, scoped, tag = 'scoped memory for albert_regression_forward.1']
    %10 = vsyncpa [#allocation3], 0
    // Predicated region
    $region2: #{albert_regression_forward.1} parent=1 // pred_check
      _
    $region3: #{albert_regression_forward.1} parent=1 // pred_check_branch
      %12 = sbr.rel (0) target = $region5
    $region4: #{albert_regression_forward.1} parent=1 // pred_region
      _
    $region5: #{albert_regression_forward.1} parent=1 // pred_fallthru
      _
    // Predicated region
    $region6: #{albert_regression_forward.1} parent=1 // pred_check
      _
    $region7: #{albert_regression_forward.1} parent=1 // pred_check_branch
      %14 = sbr.rel (0) target = $region9
    $region8: #{albert_regression_forward.1} parent=1 // pred_region
      _
    $region9: #{albert_regression_forward.1} parent=1 // pred_fallthru
      _
    // Predicated region
    $region10: #{albert_regression_forward.1} parent=1 // pred_check
      _
    $region11: #{albert_regression_forward.1} parent=1 // pred_check_branch
      %16 = sbr.rel (0) target = $region13
    $region12: #{albert_regression_forward.1} parent=1 // pred_region
      _
    $region13: #{albert_regression_forward.1} parent=1 // pred_fallthru
      _
    // Predicated region
    $region14: #{albert_regression_forward.1} parent=1 // pred_check
      _
    $region15: #{albert_regression_forward.1} parent=1 // pred_check_branch
      %18 = sbr.rel (0) target = $region17
    $region16: #{albert_regression_forward.1} parent=1 // pred_region
      _
    $region17: #{albert_regression_forward.1} parent=1 // pred_fallthru
      _
    // Predicated region
    $region18: #{albert_regression_forward.1} parent=1 // pred_check
      _
    $region19: #{albert_regression_forward.1} parent=1 // pred_check_branch
      %20 = sbr.rel (0) target = $region21
    $region20: #{albert_regression_forward.1} parent=1 // pred_region
      _
    $region21: #{albert_regression_forward.1} parent=1 // pred_fallthru
      _
    %v21 = vld [vmem:[%s0] sm:$0xff]
    %v22 = vld [vmem:[%s0 + $0x8] sm:$0xff]
    %v23 = vld [vmem:[%s4 + $0xd0] sm:$0x1]
    %v24 = vld [vmem:[%s4 + $0xd8] sm:$0x1]
    %vm25 = vcmask 130048
    %v26 = vsel %vm25, %v21, 0.0
    %27 = vadd.xlane.f32.xlu0 %v26
    %v28 = vpop.xlane.xlu0 %27
    %v29 = vsel %vm25, %v22, 0.0
    %30 = vadd.xlane.f32.xlu0 %v29
    %v31 = vpop.xlane.xlu0 %30
    %v32 = vrcp.pop 16.0
    %v33 = vmul.f32 16.0, %v32
    %v34 = vsub.f32 1.0, %v33
    %v35 = vmul.f32 %v32, %v34
    %v36 = vadd.f32 %v32, %v35
    %vm37 = vweird.f32 %v32
    %v38 = vsel %vm37, %v32, %v36
    %v39 = vmul.f32 %v28, %v38
    %v40 = vmul.f32 %v31, %v38
    %v41 = vsub.f32 %v21, %v39
    %v42 = vsub.f32 %v22, %v40
    %v43 = vmul.f32 %v41, %v41
    %v44 = vmul.f32 %v42, %v42
    %v45 = vsel %vm25, %v43, 0.0
    %46 = vadd.xlane.f32.xlu0 %v45
    %v47 = vpop.xlane.xlu0 %46
    %v48 = vsel %vm25, %v44, 0.0
    %49 = vadd.xlane.f32.xlu0 %v48
    %v50 = vpop.xlane.xlu0 %49
    %v51 = vmul.f32 %v47, %v38
    %v52 = vmul.f32 %v50, %v38
    %v53 = vadd.f32 %v51, 1e-12
    %v54 = vadd.f32 %v52, 1e-12
    %v55 = vrsqrt.pop %v53
    %v56 = vmul.f32 %v55, %v53
    %v57 = vmul.f32 %v56, %v55
    %v58 = vmul.f32 0.5, %v57
    %v59 = vsub.f32 1.5, %v58
    %v60 = vmul.f32 %v55, %v59
    %vm61 = vweird.f32 %v53
    %vm62 = vweird.f32 %v55
    %vm63 = vmor %vm61, %vm62
    %v64 = vsel %vm63, %v55, %v60
    %v65 = vrsqrt.pop %v54
    %v66 = vmul.f32 %v65, %v54
    %v67 = vmul.f32 %v66, %v65
    %v68 = vmul.f32 0.5, %v67
    %v69 = vsub.f32 1.5, %v68
    %v70 = vmul.f32 %v65, %v69
    %vm71 = vweird.f32 %v54
    %vm72 = vweird.f32 %v65
    %vm73 = vmor %vm71, %vm72
    %v74 = vsel %vm73, %v65, %v70
    %v75 = vmul.f32 %v41, %v64
    %v76 = vmul.f32 %v42, %v74
    %v77 = vperm.slane %v23, 0
    %v78 = vmul.f32 %v75, %v77
    %v79 = vmul.f32 %v76, %v77
    %v80 = vperm.slane %v24, 0
    %v81 = vadd.f32 %v78, %v80
    %v82 = vadd.f32 %v79, %v80
    %v83 = vld [vmem:[%s4] sm:$0xff]
    %v84 = vld [vmem:[%s4 + $0x8] sm:$0xff]
    %v85 = vld [vmem:[%s4 + $0xe0] sm:$0x1]
    %v86 = vperm.slane %v85, 0
    %v88 = vsel %vm25, %v81, 0
    %v91 = vsel %vm25, %v82, 0
    %93 = vmatpush.msra.mxu0 0.0
    %94 = vmatpush.msra.mxu0 0.0
    %95 = vmatpush.msra.mxu0 0.0
    %96 = vmatpush.msra.mxu0 0.0
    %97 = vmatpush.msra.mxu0 0.0
    %98 = vmatpush.msra.mxu0 0.0
    %99 = vmatpush.msra.mxu0 0.0
    %100 = vmatpush.msra.mxu0 0.0
    %101 = vmatpush.msra.mxu0 0.0
    %102 = vmatpush.msra.mxu0 0.0
    %103 = vmatpush.msra.mxu0 0.0
    %104 = vmatpush.msra.mxu0 0.0
    %105 = vmatpush.msra.mxu0 0.0
    %106 = vmatpush.msra.mxu0 0.0
    %107 = vmatpush.msra.mxu0 %v84
    %108 = vmatpush.msra.mxu0 %v83
    %109 = vmatmul.f32.gmra.mxu0 %v88
    %v110 = vpop.f32.mrf.mxu0
    %v111 = vadd.f32 %v86, %v110
    %112 = vmatmul.f32.gmra.mxu0 %v91
    %v113 = vpop.f32.mrf.mxu0
    %v114 = vadd.f32 %v86, %v113
    %115 = vdwg.mxu0
    %v116 = vld [vmem:[%s1] sm:$0x1]
    %v117 = vld [vmem:[%s1 + $0x1] sm:$0x1]
    %v118 = vld [vmem:[%s1 + $0x2] sm:$0x1]
    %v119 = vld [vmem:[%s1 + $0x3] sm:$0x1]
    %v120 = vld [vmem:[%s1 + $0x4] sm:$0x1]
    %v121 = vld [vmem:[%s1 + $0x5] sm:$0x1]
    %v122 = vld [vmem:[%s1 + $0x6] sm:$0x1]
    %v123 = vld [vmem:[%s1 + $0x7] sm:$0x1]
    %v124 = vld [vmem:[%s2] sm:$0xff]
    %v125 = vld [vmem:[%s2 + $0x8] sm:$0xff]
    %v126 = vld [vmem:[%s2 + $0x10] sm:$0xff]
    %v127 = vld [vmem:[%s2 + $0x18] sm:$0xff]
    %v128 = vld [vmem:[%s2 + $0x20] sm:$0xff]
    %v129 = vld [vmem:[%s2 + $0x28] sm:$0xff]
    %v130 = vld [vmem:[%s2 + $0x30] sm:$0xff]
    %v131 = vld [vmem:[%s2 + $0x38] sm:$0xff]
    %v132 = vld [vmem:[%s2 + $0x40] sm:$0xff]
    %v133 = vld [vmem:[%s2 + $0x48] sm:$0xff]
    %v134 = vld [vmem:[%s2 + $0x50] sm:$0xff]
    %v135 = vld [vmem:[%s2 + $0x58] sm:$0xff]
    %v136 = vld [vmem:[%s2 + $0x60] sm:$0xff]
    %v137 = vld [vmem:[%s2 + $0x68] sm:$0xff]
    %v138 = vld [vmem:[%s2 + $0x70] sm:$0xff]
    %v139 = vld [vmem:[%s2 + $0x78] sm:$0xff]
    %v140 = vld [vmem:[%s3] sm:$0x1]
    %v141 = vld [vmem:[%s3 + $0x1] sm:$0x1]
    %v142 = vld [vmem:[%s3 + $0x2] sm:$0x1]
    %v143 = vld [vmem:[%s3 + $0x3] sm:$0x1]
    %v144 = vld [vmem:[%s4 + $0x10] sm:$0xff]
    %v145 = vld [vmem:[%s4 + $0x18] sm:$0xff]
    %v146 = vld [vmem:[%s4 + $0x20] sm:$0xff]
    %v147 = vld [vmem:[%s4 + $0x28] sm:$0xff]
    %v148 = vld [vmem:[%s4 + $0xe8] sm:$0x1]
    %v149 = vld [vmem:[%s4 + $0xf0] sm:$0x1]
    %v150 = vld [vmem:[%s4 + $0xf8] sm:$0x1]
    %v151 = vld [vmem:[%s4 + $0x30] sm:$0xff]
    %v152 = vld [vmem:[%s4 + $0x38] sm:$0xff]
    %v153 = vld [vmem:[%s4 + $0x40] sm:$0xff]
    %v154 = vld [vmem:[%s4 + $0x48] sm:$0xff]
    %v155 = vld [vmem:[%s4 + $0x100] sm:$0x1]
    %v156 = vld [vmem:[%s4 + $0x50] sm:$0xff]
    %v157 = vld [vmem:[%s4 + $0x58] sm:$0xff]
    %v158 = vld [vmem:[%s4 + $0x60] sm:$0xff]
    %v159 = vld [vmem:[%s4 + $0x68] sm:$0xff]
    %v160 = vld [vmem:[%s4 + $0x70] sm:$0xff]
    %v161 = vld [vmem:[%s4 + $0x78] sm:$0xff]
    %v162 = vld [vmem:[%s4 + $0x80] sm:$0xff]
    %v163 = vld [vmem:[%s4 + $0x88] sm:$0xff]
    %v164 = vld [vmem:[%s4 + $0x108] sm:$0x1]
    %v165 = vld [vmem:[%s4 + $0x110] sm:$0x1]
    %v166 = vld [vmem:[%s4 + $0x118] sm:$0x1]
    %v171 = vperm.slane %v140, 0
    %v172 = vperm.slane %v141, 0
    %v173 = vperm.slane %v142, 0
    %v174 = vperm.slane %v143, 0
    %vm179 = vcmask 261120
    %v181 = vsel %vm179, %v111, 0
    %183 = vmatpush.msra.mxu0 0.0
    %184 = vmatpush.msra.mxu0 0.0
    %185 = vmatpush.msra.mxu0 0.0
    %186 = vmatpush.msra.mxu0 0.0
    %187 = vmatpush.msra.mxu0 0.0
    %188 = vmatpush.msra.mxu0 0.0
    %189 = vmatpush.msra.mxu0 0.0
    %190 = vmatpush.msra.mxu0 0.0
    %191 = vmatpush.msra.mxu0 0.0
    %192 = vmatpush.msra.mxu0 0.0
    %193 = vmatpush.msra.mxu0 0.0
    %194 = vmatpush.msra.mxu0 0.0
    %195 = vmatpush.msra.mxu0 %v127
    %196 = vmatpush.msra.mxu0 %v126
    %197 = vmatpush.msra.mxu0 %v125
    %198 = vmatpush.msra.mxu0 %v124
    %199 = vmatmul.f32.gmra.mxu0 %v181
    %v200 = vpop.f32.mrf.mxu0
    %v201 = vadd.f32 %v171, %v200
    %202 = vdwg.mxu0
    %203 = vmatpush.msra.mxu0 0.0
    %204 = vmatpush.msra.mxu0 0.0
    %205 = vmatpush.msra.mxu0 0.0
    %206 = vmatpush.msra.mxu0 0.0
    %207 = vmatpush.msra.mxu0 0.0
    %208 = vmatpush.msra.mxu0 0.0
    %209 = vmatpush.msra.mxu0 0.0
    %210 = vmatpush.msra.mxu0 0.0
    %211 = vmatpush.msra.mxu0 0.0
    %212 = vmatpush.msra.mxu0 0.0
    %213 = vmatpush.msra.mxu0 0.0
    %214 = vmatpush.msra.mxu0 0.0
    %215 = vmatpush.msra.mxu0 %v131
    %216 = vmatpush.msra.mxu0 %v130
    %217 = vmatpush.msra.mxu0 %v129
    %218 = vmatpush.msra.mxu0 %v128
    %219 = vmatmul.f32.gmra.mxu0 %v181
    %v220 = vpop.f32.mrf.mxu0
    %v221 = vadd.f32 %v172, %v220
    %222 = vdwg.mxu0
    %223 = vmatpush.msra.mxu0 0.0
    %224 = vmatpush.msra.mxu0 0.0
    %225 = vmatpush.msra.mxu0 0.0
    %226 = vmatpush.msra.mxu0 0.0
    %227 = vmatpush.msra.mxu0 0.0
    %228 = vmatpush.msra.mxu0 0.0
    %229 = vmatpush.msra.mxu0 0.0
    %230 = vmatpush.msra.mxu0 0.0
    %231 = vmatpush.msra.mxu0 0.0
    %232 = vmatpush.msra.mxu0 0.0
    %233 = vmatpush.msra.mxu0 0.0
    %234 = vmatpush.msra.mxu0 0.0
    %235 = vmatpush.msra.mxu0 %v135
    %236 = vmatpush.msra.mxu0 %v134
    %237 = vmatpush.msra.mxu0 %v133
    %238 = vmatpush.msra.mxu0 %v132
    %239 = vmatmul.f32.gmra.mxu0 %v181
    %v240 = vpop.f32.mrf.mxu0
    %v241 = vadd.f32 %v173, %v240
    %242 = vdwg.mxu0
    %243 = vmatpush.msra.mxu0 0.0
    %244 = vmatpush.msra.mxu0 0.0
    %245 = vmatpush.msra.mxu0 0.0
    %246 = vmatpush.msra.mxu0 0.0
    %247 = vmatpush.msra.mxu0 0.0
    %248 = vmatpush.msra.mxu0 0.0
    %249 = vmatpush.msra.mxu0 0.0
    %250 = vmatpush.msra.mxu0 0.0
    %251 = vmatpush.msra.mxu0 0.0
    %252 = vmatpush.msra.mxu0 0.0
    %253 = vmatpush.msra.mxu0 0.0
    %254 = vmatpush.msra.mxu0 0.0
    %255 = vmatpush.msra.mxu0 %v139
    %256 = vmatpush.msra.mxu0 %v138
    %257 = vmatpush.msra.mxu0 %v137
    %258 = vmatpush.msra.mxu0 %v136
    %259 = vmatmul.f32.gmra.mxu0 %v181
    %v260 = vpop.f32.mrf.mxu0
    %v261 = vadd.f32 %v174, %v260
    %262 = vdwg.mxu0
    %v264 = vsel %vm179, %v114, 0
    %266 = vmatpush.msra.mxu0 0.0
    %267 = vmatpush.msra.mxu0 0.0
    %268 = vmatpush.msra.mxu0 0.0
    %269 = vmatpush.msra.mxu0 0.0
    %270 = vmatpush.msra.mxu0 0.0
    %271 = vmatpush.msra.mxu0 0.0
    %272 = vmatpush.msra.mxu0 0.0
    %273 = vmatpush.msra.mxu0 0.0
    %274 = vmatpush.msra.mxu0 0.0
    %275 = vmatpush.msra.mxu0 0.0
    %276 = vmatpush.msra.mxu0 0.0
    %277 = vmatpush.msra.mxu0 0.0
    %278 = vmatpush.msra.mxu0 %v127
    %279 = vmatpush.msra.mxu0 %v126
    %280 = vmatpush.msra.mxu0 %v125
    %281 = vmatpush.msra.mxu0 %v124
    %282 = vmatmul.f32.gmra.mxu0 %v264
    %v283 = vpop.f32.mrf.mxu0
    %v284 = vadd.f32 %v171, %v283
    %285 = vdwg.mxu0
    %286 = vmatpush.msra.mxu0 0.0
    %287 = vmatpush.msra.mxu0 0.0
    %288 = vmatpush.msra.mxu0 0.0
    %289 = vmatpush.msra.mxu0 0.0
    %290 = vmatpush.msra.mxu0 0.0
    %291 = vmatpush.msra.mxu0 0.0
    %292 = vmatpush.msra.mxu0 0.0
    %293 = vmatpush.msra.mxu0 0.0
    %294 = vmatpush.msra.mxu0 0.0
    %295 = vmatpush.msra.mxu0 0.0
    %296 = vmatpush.msra.mxu0 0.0
    %297 = vmatpush.msra.mxu0 0.0
    %298 = vmatpush.msra.mxu0 %v131
    %299 = vmatpush.msra.mxu0 %v130
    %300 = vmatpush.msra.mxu0 %v129
    %301 = vmatpush.msra.mxu0 %v128
    %302 = vmatmul.f32.gmra.mxu0 %v264
    %v303 = vpop.f32.mrf.mxu0
    %v304 = vadd.f32 %v172, %v303
    %305 = vdwg.mxu0
    %306 = vmatpush.msra.mxu0 0.0
    %307 = vmatpush.msra.mxu0 0.0
    %308 = vmatpush.msra.mxu0 0.0
    %309 = vmatpush.msra.mxu0 0.0
    %310 = vmatpush.msra.mxu0 0.0
    %311 = vmatpush.msra.mxu0 0.0
    %312 = vmatpush.msra.mxu0 0.0
    %313 = vmatpush.msra.mxu0 0.0
    %314 = vmatpush.msra.mxu0 0.0
    %315 = vmatpush.msra.mxu0 0.0
    %316 = vmatpush.msra.mxu0 0.0
    %317 = vmatpush.msra.mxu0 0.0
    %318 = vmatpush.msra.mxu0 %v135
    %319 = vmatpush.msra.mxu0 %v134
    %320 = vmatpush.msra.mxu0 %v133
    %321 = vmatpush.msra.mxu0 %v132
    %322 = vmatmul.f32.gmra.mxu0 %v264
    %v323 = vpop.f32.mrf.mxu0
    %v324 = vadd.f32 %v173, %v323
    %325 = vdwg.mxu0
    %326 = vmatpush.msra.mxu0 0.0
    %327 = vmatpush.msra.mxu0 0.0
    %328 = vmatpush.msra.mxu0 0.0
    %329 = vmatpush.msra.mxu0 0.0
    %330 = vmatpush.msra.mxu0 0.0
    %331 = vmatpush.msra.mxu0 0.0
    %332 = vmatpush.msra.mxu0 0.0
    %333 = vmatpush.msra.mxu0 0.0
    %334 = vmatpush.msra.mxu0 0.0
    %335 = vmatpush.msra.mxu0 0.0
    %336 = vmatpush.msra.mxu0 0.0
    %337 = vmatpush.msra.mxu0 0.0
    %338 = vmatpush.msra.mxu0 %v139
    %339 = vmatpush.msra.mxu0 %v138
    %340 = vmatpush.msra.mxu0 %v137
    %341 = vmatpush.msra.mxu0 %v136
    %342 = vmatmul.f32.gmra.mxu0 %v264
    %v343 = vpop.f32.mrf.mxu0
    %v344 = vadd.f32 %v174, %v343
    %345 = vdwg.mxu0
    %347 = vrot.lane.b32.xlu0 %v201, 120
    %v348 = vpop.permute.xlu0 %347
    %vm349 = vcmask 64512
    %v350 = vsel %vm349, %v201, 0
    %v352 = vsel %vm349, %v348, 0
    %354 = vmatpush.xpose.msra.mxu0 0.0
    %355 = vmatpush.xpose.msra.mxu0 0.0
    %356 = vmatpush.xpose.msra.mxu0 0.0
    %357 = vmatpush.xpose.msra.mxu0 0.0
    %358 = vmatpush.xpose.msra.mxu0 0.0
    %359 = vmatpush.xpose.msra.mxu0 0.0
    %360 = vmatpush.xpose.msra.mxu0 0.0
    %361 = vmatpush.xpose.msra.mxu0 0.0
    %362 = vmatpush.xpose.msra.mxu0 0.0
    %363 = vmatpush.xpose.msra.mxu0 0.0
    %364 = vmatpush.xpose.msra.mxu0 0.0
    %365 = vmatpush.xpose.msra.mxu0 0.0
    %366 = vmatpush.xpose.msra.mxu0 0.0
    %367 = vmatpush.xpose.msra.mxu0 0.0
    %368 = vmatpush.xpose.msra.mxu0 0.0
    %369 = vmatpush.xpose.msra.mxu0 %v352
    %370 = vmatmul.f32.gmra.mxu0 %v350
    %v371 = vpop.f32.mrf.mxu0
    %v372 = vadd.f32 0.0, %v371
    %373 = vdwg.mxu0
    %375 = vrot.lane.b32.xlu0 %v221, 120
    %v376 = vpop.permute.xlu0 %375
    %v377 = vsel %vm349, %v221, 0
    %v379 = vsel %vm349, %v376, 0
    %381 = vmatpush.xpose.msra.mxu0 0.0
    %382 = vmatpush.xpose.msra.mxu0 0.0
    %383 = vmatpush.xpose.msra.mxu0 0.0
    %384 = vmatpush.xpose.msra.mxu0 0.0
    %385 = vmatpush.xpose.msra.mxu0 0.0
    %386 = vmatpush.xpose.msra.mxu0 0.0
    %387 = vmatpush.xpose.msra.mxu0 0.0
    %388 = vmatpush.xpose.msra.mxu0 0.0
    %389 = vmatpush.xpose.msra.mxu0 0.0
    %390 = vmatpush.xpose.msra.mxu0 0.0
    %391 = vmatpush.xpose.msra.mxu0 0.0
    %392 = vmatpush.xpose.msra.mxu0 0.0
    %393 = vmatpush.xpose.msra.mxu0 0.0
    %394 = vmatpush.xpose.msra.mxu0 0.0
    %395 = vmatpush.xpose.msra.mxu0 0.0
    %396 = vmatpush.xpose.msra.mxu0 %v379
    %397 = vmatmul.f32.gmra.mxu0 %v377
    %v398 = vpop.f32.mrf.mxu0
    %v399 = vadd.f32 0.0, %v398
    %400 = vdwg.mxu0
    %402 = vrot.lane.b32.xlu0 %v241, 120
    %v403 = vpop.permute.xlu0 %402
    %v404 = vsel %vm349, %v241, 0
    %v406 = vsel %vm349, %v403, 0
    %408 = vmatpush.xpose.msra.mxu0 0.0
    %409 = vmatpush.xpose.msra.mxu0 0.0
    %410 = vmatpush.xpose.msra.mxu0 0.0
    %411 = vmatpush.xpose.msra.mxu0 0.0
    %412 = vmatpush.xpose.msra.mxu0 0.0
    %413 = vmatpush.xpose.msra.mxu0 0.0
    %414 = vmatpush.xpose.msra.mxu0 0.0
    %415 = vmatpush.xpose.msra.mxu0 0.0
    %416 = vmatpush.xpose.msra.mxu0 0.0
    %417 = vmatpush.xpose.msra.mxu0 0.0
    %418 = vmatpush.xpose.msra.mxu0 0.0
    %419 = vmatpush.xpose.msra.mxu0 0.0
    %420 = vmatpush.xpose.msra.mxu0 0.0
    %421 = vmatpush.xpose.msra.mxu0 0.0
    %422 = vmatpush.xpose.msra.mxu0 0.0
    %423 = vmatpush.xpose.msra.mxu0 %v406
    %424 = vmatmul.f32.gmra.mxu0 %v404
    %v425 = vpop.f32.mrf.mxu0
    %v426 = vadd.f32 0.0, %v425
    %427 = vdwg.mxu0
    %429 = vrot.lane.b32.xlu0 %v261, 120
    %v430 = vpop.permute.xlu0 %429
    %v431 = vsel %vm349, %v261, 0
    %v433 = vsel %vm349, %v430, 0
    %435 = vmatpush.xpose.msra.mxu0 0.0
    %436 = vmatpush.xpose.msra.mxu0 0.0
    %437 = vmatpush.xpose.msra.mxu0 0.0
    %438 = vmatpush.xpose.msra.mxu0 0.0
    %439 = vmatpush.xpose.msra.mxu0 0.0
    %440 = vmatpush.xpose.msra.mxu0 0.0
    %441 = vmatpush.xpose.msra.mxu0 0.0
    %442 = vmatpush.xpose.msra.mxu0 0.0
    %443 = vmatpush.xpose.msra.mxu0 0.0
    %444 = vmatpush.xpose.msra.mxu0 0.0
    %445 = vmatpush.xpose.msra.mxu0 0.0
    %446 = vmatpush.xpose.msra.mxu0 0.0
    %447 = vmatpush.xpose.msra.mxu0 0.0
    %448 = vmatpush.xpose.msra.mxu0 0.0
    %449 = vmatpush.xpose.msra.mxu0 0.0
    %450 = vmatpush.xpose.msra.mxu0 %v433
    %451 = vmatmul.f32.gmra.mxu0 %v431
    %v452 = vpop.f32.mrf.mxu0
    %v453 = vadd.f32 0.0, %v452
    %454 = vdwg.mxu0
    %456 = vrot.lane.b32.xlu0 %v284, 120
    %v457 = vpop.permute.xlu0 %456
    %v458 = vsel %vm349, %v284, 0
    %v460 = vsel %vm349, %v457, 0
    %462 = vmatpush.xpose.msra.mxu0 0.0
    %463 = vmatpush.xpose.msra.mxu0 0.0
    %464 = vmatpush.xpose.msra.mxu0 0.0
    %465 = vmatpush.xpose.msra.mxu0 0.0
    %466 = vmatpush.xpose.msra.mxu0 0.0
    %467 = vmatpush.xpose.msra.mxu0 0.0
    %468 = vmatpush.xpose.msra.mxu0 0.0
    %469 = vmatpush.xpose.msra.mxu0 0.0
    %470 = vmatpush.xpose.msra.mxu0 0.0
    %471 = vmatpush.xpose.msra.mxu0 0.0
    %472 = vmatpush.xpose.msra.mxu0 0.0
    %473 = vmatpush.xpose.msra.mxu0 0.0
    %474 = vmatpush.xpose.msra.mxu0 0.0
    %475 = vmatpush.xpose.msra.mxu0 0.0
    %476 = vmatpush.xpose.msra.mxu0 0.0
    %477 = vmatpush.xpose.msra.mxu0 %v460
    %478 = vmatmul.f32.gmra.mxu0 %v458
    %v479 = vpop.f32.mrf.mxu0
    %v480 = vadd.f32 0.0, %v479
    %481 = vdwg.mxu0
    %483 = vrot.lane.b32.xlu0 %v304, 120
    %v484 = vpop.permute.xlu0 %483
    %v485 = vsel %vm349, %v304, 0
    %v487 = vsel %vm349, %v484, 0
    %489 = vmatpush.xpose.msra.mxu0 0.0
    %490 = vmatpush.xpose.msra.mxu0 0.0
    %491 = vmatpush.xpose.msra.mxu0 0.0
    %492 = vmatpush.xpose.msra.mxu0 0.0
    %493 = vmatpush.xpose.msra.mxu0 0.0
    %494 = vmatpush.xpose.msra.mxu0 0.0
    %495 = vmatpush.xpose.msra.mxu0 0.0
    %496 = vmatpush.xpose.msra.mxu0 0.0
    %497 = vmatpush.xpose.msra.mxu0 0.0
    %498 = vmatpush.xpose.msra.mxu0 0.0
    %499 = vmatpush.xpose.msra.mxu0 0.0
    %500 = vmatpush.xpose.msra.mxu0 0.0
    %501 = vmatpush.xpose.msra.mxu0 0.0
    %502 = vmatpush.xpose.msra.mxu0 0.0
    %503 = vmatpush.xpose.msra.mxu0 0.0
    %504 = vmatpush.xpose.msra.mxu0 %v487
    %505 = vmatmul.f32.gmra.mxu0 %v485
    %v506 = vpop.f32.mrf.mxu0
    %v507 = vadd.f32 0.0, %v506
    %508 = vdwg.mxu0
    %510 = vrot.lane.b32.xlu0 %v324, 120
    %v511 = vpop.permute.xlu0 %510
    %v512 = vsel %vm349, %v324, 0
    %v514 = vsel %vm349, %v511, 0
    %516 = vmatpush.xpose.msra.mxu0 0.0
    %517 = vmatpush.xpose.msra.mxu0 0.0
    %518 = vmatpush.xpose.msra.mxu0 0.0
    %519 = vmatpush.xpose.msra.mxu0 0.0
    %520 = vmatpush.xpose.msra.mxu0 0.0
    %521 = vmatpush.xpose.msra.mxu0 0.0
    %522 = vmatpush.xpose.msra.mxu0 0.0
    %523 = vmatpush.xpose.msra.mxu0 0.0
    %524 = vmatpush.xpose.msra.mxu0 0.0
    %525 = vmatpush.xpose.msra.mxu0 0.0
    %526 = vmatpush.xpose.msra.mxu0 0.0
    %527 = vmatpush.xpose.msra.mxu0 0.0
    %528 = vmatpush.xpose.msra.mxu0 0.0
    %529 = vmatpush.xpose.msra.mxu0 0.0
    %530 = vmatpush.xpose.msra.mxu0 0.0
    %531 = vmatpush.xpose.msra.mxu0 %v514
    %532 = vmatmul.f32.gmra.mxu0 %v512
    %v533 = vpop.f32.mrf.mxu0
    %v534 = vadd.f32 0.0, %v533
    %535 = vdwg.mxu0
    %537 = vrot.lane.b32.xlu0 %v344, 120
    %v538 = vpop.permute.xlu0 %537
    %v539 = vsel %vm349, %v344, 0
    %v541 = vsel %vm349, %v538, 0
    %543 = vmatpush.xpose.msra.mxu0 0.0
    %544 = vmatpush.xpose.msra.mxu0 0.0
    %545 = vmatpush.xpose.msra.mxu0 0.0
    %546 = vmatpush.xpose.msra.mxu0 0.0
    %547 = vmatpush.xpose.msra.mxu0 0.0
    %548 = vmatpush.xpose.msra.mxu0 0.0
    %549 = vmatpush.xpose.msra.mxu0 0.0
    %550 = vmatpush.xpose.msra.mxu0 0.0
    %551 = vmatpush.xpose.msra.mxu0 0.0
    %552 = vmatpush.xpose.msra.mxu0 0.0
    %553 = vmatpush.xpose.msra.mxu0 0.0
    %554 = vmatpush.xpose.msra.mxu0 0.0
    %555 = vmatpush.xpose.msra.mxu0 0.0
    %556 = vmatpush.xpose.msra.mxu0 0.0
    %557 = vmatpush.xpose.msra.mxu0 0.0
    %558 = vmatpush.xpose.msra.mxu0 %v541
    %559 = vmatmul.f32.gmra.mxu0 %v539
    %v560 = vpop.f32.mrf.mxu0
    %v561 = vadd.f32 0.0, %v560
    %562 = vdwg.mxu0
    %v563 = vmul.f32 %v372, 0.35355338
    %v564 = vmul.f32 %v399, 0.35355338
    %v565 = vmul.f32 %v426, 0.35355338
    %v566 = vmul.f32 %v453, 0.35355338
    %v567 = vmul.f32 %v480, 0.35355338
    %v568 = vmul.f32 %v507, 0.35355338
    %v569 = vmul.f32 %v534, 0.35355338
    %v570 = vmul.f32 %v561, 0.35355338
    %v579 = vperm.slane %v116, 0
    %v580 = vperm.slane %v117, 0
    %v581 = vperm.slane %v118, 0
    %v582 = vperm.slane %v119, 0
    %v583 = vperm.slane %v120, 0
    %v584 = vperm.slane %v121, 0
    %v585 = vperm.slane %v122, 0
    %v586 = vperm.slane %v123, 0
    %v595 = vadd.f32 %v563, %v579
    %v596 = vadd.f32 %v564, %v580
    %v597 = vadd.f32 %v565, %v581
    %v598 = vadd.f32 %v566, %v582
    %v599 = vadd.f32 %v567, %v583
    %v600 = vadd.f32 %v568, %v584
    %v601 = vadd.f32 %v569, %v585
    %v602 = vadd.f32 %v570, %v586
    %v603 = vsel %vm349, %v595, -inf
    %604 = vmax.xlane.f32.xlu0 %v603
    %v605 = vpop.xlane.xlu0 %604
    %v606 = vsel %vm349, %v596, -inf
    %607 = vmax.xlane.f32.xlu0 %v606
    %v608 = vpop.xlane.xlu0 %607
    %v609 = vsel %vm349, %v597, -inf
    %610 = vmax.xlane.f32.xlu0 %v609
    %v611 = vpop.xlane.xlu0 %610
    %v612 = vsel %vm349, %v598, -inf
    %613 = vmax.xlane.f32.xlu0 %v612
    %v614 = vpop.xlane.xlu0 %613
    %v615 = vsel %vm349, %v599, -inf
    %616 = vmax.xlane.f32.xlu0 %v615
    %v617 = vpop.xlane.xlu0 %616
    %v618 = vsel %vm349, %v600, -inf
    %619 = vmax.xlane.f32.xlu0 %v618
    %v620 = vpop.xlane.xlu0 %619
    %v621 = vsel %vm349, %v601, -inf
    %622 = vmax.xlane.f32.xlu0 %v621
    %v623 = vpop.xlane.xlu0 %622
    %v624 = vsel %vm349, %v602, -inf
    %625 = vmax.xlane.f32.xlu0 %v624
    %v626 = vpop.xlane.xlu0 %625
    %v627 = vsub.f32 %v595, %v605
    %v628 = vsub.f32 %v596, %v608
    %v629 = vsub.f32 %v597, %v611
    %v630 = vsub.f32 %v598, %v614
    %v631 = vsub.f32 %v599, %v617
    %v632 = vsub.f32 %v600, %v620
    %v633 = vsub.f32 %v601, %v623
    %v634 = vsub.f32 %v602, %v626
    %v635 = vmul.f32 %v627, 1.442695
    %v636 = vpow.pop %v635
    %v637 = vmul.f32 %v628, 1.442695
    %v638 = vpow.pop %v637
    %v639 = vmul.f32 %v629, 1.442695
    %v640 = vpow.pop %v639
    %v641 = vmul.f32 %v630, 1.442695
    %v642 = vpow.pop %v641
    %v643 = vmul.f32 %v631, 1.442695
    %v644 = vpow.pop %v643
    %v645 = vmul.f32 %v632, 1.442695
    %v646 = vpow.pop %v645
    %v647 = vmul.f32 %v633, 1.442695
    %v648 = vpow.pop %v647
    %v649 = vmul.f32 %v634, 1.442695
    %v650 = vpow.pop %v649
    %v651 = vsel %vm349, %v636, 0.0
    %652 = vadd.xlane.f32.xlu0 %v651
    %v653 = vpop.xlane.xlu0 %652
    %v654 = vsel %vm349, %v638, 0.0
    %655 = vadd.xlane.f32.xlu0 %v654
    %v656 = vpop.xlane.xlu0 %655
    %v657 = vsel %vm349, %v640, 0.0
    %658 = vadd.xlane.f32.xlu0 %v657
    %v659 = vpop.xlane.xlu0 %658
    %v660 = vsel %vm349, %v642, 0.0
    %661 = vadd.xlane.f32.xlu0 %v660
    %v662 = vpop.xlane.xlu0 %661
    %v663 = vsel %vm349, %v644, 0.0
    %664 = vadd.xlane.f32.xlu0 %v663
    %v665 = vpop.xlane.xlu0 %664
    %v666 = vsel %vm349, %v646, 0.0
    %667 = vadd.xlane.f32.xlu0 %v666
    %v668 = vpop.xlane.xlu0 %667
    %v669 = vsel %vm349, %v648, 0.0
    %670 = vadd.xlane.f32.xlu0 %v669
    %v671 = vpop.xlane.xlu0 %670
    %v672 = vsel %vm349, %v650, 0.0
    %673 = vadd.xlane.f32.xlu0 %v672
    %v674 = vpop.xlane.xlu0 %673
    %v675 = vrcp.pop %v653
    %v676 = vrcp.pop %v656
    %v677 = vrcp.pop %v659
    %v678 = vrcp.pop %v662
    %v679 = vrcp.pop %v665
    %v680 = vrcp.pop %v668
    %v681 = vrcp.pop %v671
    %v682 = vrcp.pop %v674
    %v683 = vmul.f32 %v636, %v675
    %v684 = vmul.f32 %v638, %v676
    %v685 = vmul.f32 %v640, %v677
    %v686 = vmul.f32 %v642, %v678
    %v687 = vmul.f32 %v644, %v679
    %v688 = vmul.f32 %v646, %v680
    %v689 = vmul.f32 %v648, %v681
    %v690 = vmul.f32 %v650, %v682
    %691 = vrot.lane.b32.xlu0 %v201, 112
    %v692 = vpop.permute.xlu0 %691
    %v695 = vsel %vm349, %v683, 0
    %697 = vmatpush.msra.mxu0 0.0
    %698 = vmatpush.msra.mxu0 0.0
    %699 = vmatpush.msra.mxu0 0.0
    %700 = vmatpush.msra.mxu0 0.0
    %701 = vmatpush.msra.mxu0 0.0
    %702 = vmatpush.msra.mxu0 0.0
    %703 = vmatpush.msra.mxu0 0.0
    %704 = vmatpush.msra.mxu0 0.0
    %705 = vmatpush.msra.mxu0 0.0
    %706 = vmatpush.msra.mxu0 0.0
    %707 = vmatpush.msra.mxu0 0.0
    %708 = vmatpush.msra.mxu0 0.0
    %709 = vmatpush.msra.mxu0 0.0
    %710 = vmatpush.msra.mxu0 0.0
    %711 = vmatpush.msra.mxu0 0.0
    %712 = vmatpush.msra.mxu0 %v692
    %713 = vmatmul.f32.gmra.mxu0 %v695
    %v714 = vpop.f32.mrf.mxu0
    %v715 = vadd.f32 0.0, %v714
    %716 = vdwg.mxu0
    %717 = vrot.lane.b32.xlu0 %v221, 112
    %v718 = vpop.permute.xlu0 %717
    %v721 = vsel %vm349, %v684, 0
    %723 = vmatpush.msra.mxu0 0.0
    %724 = vmatpush.msra.mxu0 0.0
    %725 = vmatpush.msra.mxu0 0.0
    %726 = vmatpush.msra.mxu0 0.0
    %727 = vmatpush.msra.mxu0 0.0
    %728 = vmatpush.msra.mxu0 0.0
    %729 = vmatpush.msra.mxu0 0.0
    %730 = vmatpush.msra.mxu0 0.0
    %731 = vmatpush.msra.mxu0 0.0
    %732 = vmatpush.msra.mxu0 0.0
    %733 = vmatpush.msra.mxu0 0.0
    %734 = vmatpush.msra.mxu0 0.0
    %735 = vmatpush.msra.mxu0 0.0
    %736 = vmatpush.msra.mxu0 0.0
    %737 = vmatpush.msra.mxu0 0.0
    %738 = vmatpush.msra.mxu0 %v718
    %739 = vmatmul.f32.gmra.mxu0 %v721
    %v740 = vpop.f32.mrf.mxu0
    %v741 = vadd.f32 0.0, %v740
    %742 = vdwg.mxu0
    %743 = vrot.lane.b32.xlu0 %v241, 112
    %v744 = vpop.permute.xlu0 %743
    %v747 = vsel %vm349, %v685, 0
    %749 = vmatpush.msra.mxu0 0.0
    %750 = vmatpush.msra.mxu0 0.0
    %751 = vmatpush.msra.mxu0 0.0
    %752 = vmatpush.msra.mxu0 0.0
    %753 = vmatpush.msra.mxu0 0.0
    %754 = vmatpush.msra.mxu0 0.0
    %755 = vmatpush.msra.mxu0 0.0
    %756 = vmatpush.msra.mxu0 0.0
    %757 = vmatpush.msra.mxu0 0.0
    %758 = vmatpush.msra.mxu0 0.0
    %759 = vmatpush.msra.mxu0 0.0
    %760 = vmatpush.msra.mxu0 0.0
    %761 = vmatpush.msra.mxu0 0.0
    %762 = vmatpush.msra.mxu0 0.0
    %763 = vmatpush.msra.mxu0 0.0
    %764 = vmatpush.msra.mxu0 %v744
    %765 = vmatmul.f32.gmra.mxu0 %v747
    %v766 = vpop.f32.mrf.mxu0
    %v767 = vadd.f32 0.0, %v766
    %768 = vdwg.mxu0
    %769 = vrot.lane.b32.xlu0 %v261, 112
    %v770 = vpop.permute.xlu0 %769
    %v773 = vsel %vm349, %v686, 0
    %775 = vmatpush.msra.mxu0 0.0
    %776 = vmatpush.msra.mxu0 0.0
    %777 = vmatpush.msra.mxu0 0.0
    %778 = vmatpush.msra.mxu0 0.0
    %779 = vmatpush.msra.mxu0 0.0
    %780 = vmatpush.msra.mxu0 0.0
    %781 = vmatpush.msra.mxu0 0.0
    %782 = vmatpush.msra.mxu0 0.0
    %783 = vmatpush.msra.mxu0 0.0
    %784 = vmatpush.msra.mxu0 0.0
    %785 = vmatpush.msra.mxu0 0.0
    %786 = vmatpush.msra.mxu0 0.0
    %787 = vmatpush.msra.mxu0 0.0
    %788 = vmatpush.msra.mxu0 0.0
    %789 = vmatpush.msra.mxu0 0.0
    %790 = vmatpush.msra.mxu0 %v770
    %791 = vmatmul.f32.gmra.mxu0 %v773
    %v792 = vpop.f32.mrf.mxu0
    %v793 = vadd.f32 0.0, %v792
    %794 = vdwg.mxu0
    %795 = vrot.lane.b32.xlu0 %v284, 112
    %v796 = vpop.permute.xlu0 %795
    %v799 = vsel %vm349, %v687, 0
    %801 = vmatpush.msra.mxu0 0.0
    %802 = vmatpush.msra.mxu0 0.0
    %803 = vmatpush.msra.mxu0 0.0
    %804 = vmatpush.msra.mxu0 0.0
    %805 = vmatpush.msra.mxu0 0.0
    %806 = vmatpush.msra.mxu0 0.0
    %807 = vmatpush.msra.mxu0 0.0
    %808 = vmatpush.msra.mxu0 0.0
    %809 = vmatpush.msra.mxu0 0.0
    %810 = vmatpush.msra.mxu0 0.0
    %811 = vmatpush.msra.mxu0 0.0
    %812 = vmatpush.msra.mxu0 0.0
    %813 = vmatpush.msra.mxu0 0.0
    %814 = vmatpush.msra.mxu0 0.0
    %815 = vmatpush.msra.mxu0 0.0
    %816 = vmatpush.msra.mxu0 %v796
    %817 = vmatmul.f32.gmra.mxu0 %v799
    %v818 = vpop.f32.mrf.mxu0
    %v819 = vadd.f32 0.0, %v818
    %820 = vdwg.mxu0
    %821 = vrot.lane.b32.xlu0 %v304, 112
    %v822 = vpop.permute.xlu0 %821
    %v825 = vsel %vm349, %v688, 0
    %827 = vmatpush.msra.mxu0 0.0
    %828 = vmatpush.msra.mxu0 0.0
    %829 = vmatpush.msra.mxu0 0.0
    %830 = vmatpush.msra.mxu0 0.0
    %831 = vmatpush.msra.mxu0 0.0
    %832 = vmatpush.msra.mxu0 0.0
    %833 = vmatpush.msra.mxu0 0.0
    %834 = vmatpush.msra.mxu0 0.0
    %835 = vmatpush.msra.mxu0 0.0
    %836 = vmatpush.msra.mxu0 0.0
    %837 = vmatpush.msra.mxu0 0.0
    %838 = vmatpush.msra.mxu0 0.0
    %839 = vmatpush.msra.mxu0 0.0
    %840 = vmatpush.msra.mxu0 0.0
    %841 = vmatpush.msra.mxu0 0.0
    %842 = vmatpush.msra.mxu0 %v822
    %843 = vmatmul.f32.gmra.mxu0 %v825
    %v844 = vpop.f32.mrf.mxu0
    %v845 = vadd.f32 0.0, %v844
    %846 = vdwg.mxu0
    %847 = vrot.lane.b32.xlu0 %v324, 112
    %v848 = vpop.permute.xlu0 %847
    %v851 = vsel %vm349, %v689, 0
    %853 = vmatpush.msra.mxu0 0.0
    %854 = vmatpush.msra.mxu0 0.0
    %855 = vmatpush.msra.mxu0 0.0
    %856 = vmatpush.msra.mxu0 0.0
    %857 = vmatpush.msra.mxu0 0.0
    %858 = vmatpush.msra.mxu0 0.0
    %859 = vmatpush.msra.mxu0 0.0
    %860 = vmatpush.msra.mxu0 0.0
    %861 = vmatpush.msra.mxu0 0.0
    %862 = vmatpush.msra.mxu0 0.0
    %863 = vmatpush.msra.mxu0 0.0
    %864 = vmatpush.msra.mxu0 0.0
    %865 = vmatpush.msra.mxu0 0.0
    %866 = vmatpush.msra.mxu0 0.0
    %867 = vmatpush.msra.mxu0 0.0
    %868 = vmatpush.msra.mxu0 %v848
    %869 = vmatmul.f32.gmra.mxu0 %v851
    %v870 = vpop.f32.mrf.mxu0
    %v871 = vadd.f32 0.0, %v870
    %872 = vdwg.mxu0
    %873 = vrot.lane.b32.xlu0 %v344, 112
    %v874 = vpop.permute.xlu0 %873
    %v877 = vsel %vm349, %v690, 0
    %879 = vmatpush.msra.mxu0 0.0
    %880 = vmatpush.msra.mxu0 0.0
    %881 = vmatpush.msra.mxu0 0.0
    %882 = vmatpush.msra.mxu0 0.0
    %883 = vmatpush.msra.mxu0 0.0
    %884 = vmatpush.msra.mxu0 0.0
    %885 = vmatpush.msra.mxu0 0.0
    %886 = vmatpush.msra.mxu0 0.0
    %887 = vmatpush.msra.mxu0 0.0
    %888 = vmatpush.msra.mxu0 0.0
    %889 = vmatpush.msra.mxu0 0.0
    %890 = vmatpush.msra.mxu0 0.0
    %891 = vmatpush.msra.mxu0 0.0
    %892 = vmatpush.msra.mxu0 0.0
    %893 = vmatpush.msra.mxu0 0.0
    %894 = vmatpush.msra.mxu0 %v874
    %895 = vmatmul.f32.gmra.mxu0 %v877
    %v896 = vpop.f32.mrf.mxu0
    %v897 = vadd.f32 0.0, %v896
    %898 = vdwg.mxu0
    %900 = vrot.lane.b32.xlu0 %v741, 8
    %v901 = vpop.permute.xlu0 %900
    %904 = vrot.lane.b32.xlu0 %v767, 16
    %v905 = vpop.permute.xlu0 %904
    %908 = vrot.lane.b32.xlu0 %v793, 24
    %v909 = vpop.permute.xlu0 %908
    %v911 = vsel %vm349, %v715, %v901
    %v912 = vsel %vm25, %v911, %v905
    %vm913 = vcmask 195584
    %v914 = vsel %vm913, %v912, %v909
    %916 = vrot.lane.b32.xlu0 %v845, 8
    %v917 = vpop.permute.xlu0 %916
    %920 = vrot.lane.b32.xlu0 %v871, 16
    %v921 = vpop.permute.xlu0 %920
    %924 = vrot.lane.b32.xlu0 %v897, 24
    %v925 = vpop.permute.xlu0 %924
    %v927 = vsel %vm349, %v819, %v917
    %v928 = vsel %vm25, %v927, %v921
    %v929 = vsel %vm913, %v928, %v925
    %v930 = vperm.slane %v148, 0
    %v932 = vsel %vm179, %v914, 0
    %v935 = vsel %vm179, %v929, 0
    %937 = vmatpush.msra.mxu0 0.0
    %938 = vmatpush.msra.mxu0 0.0
    %939 = vmatpush.msra.mxu0 0.0
    %940 = vmatpush.msra.mxu0 0.0
    %941 = vmatpush.msra.mxu0 0.0
    %942 = vmatpush.msra.mxu0 0.0
    %943 = vmatpush.msra.mxu0 0.0
    %944 = vmatpush.msra.mxu0 0.0
    %945 = vmatpush.msra.mxu0 0.0
    %946 = vmatpush.msra.mxu0 0.0
    %947 = vmatpush.msra.mxu0 0.0
    %948 = vmatpush.msra.mxu0 0.0
    %949 = vmatpush.msra.mxu0 %v147
    %950 = vmatpush.msra.mxu0 %v146
    %951 = vmatpush.msra.mxu0 %v145
    %952 = vmatpush.msra.mxu0 %v144
    %953 = vmatmul.f32.gmra.mxu0 %v932
    %v954 = vpop.f32.mrf.mxu0
    %v955 = vadd.f32 %v930, %v954
    %956 = vmatmul.f32.gmra.mxu0 %v935
    %v957 = vpop.f32.mrf.mxu0
    %v958 = vadd.f32 %v930, %v957
    %959 = vdwg.mxu0
    %v960 = vadd.f32 %v955, %v111
    %v961 = vadd.f32 %v958, %v114
    %v962 = vsel %vm179, %v960, 0.0
    %963 = vadd.xlane.f32.xlu0 %v962
    %v964 = vpop.xlane.xlu0 %963
    %v965 = vsel %vm179, %v961, 0.0
    %966 = vadd.xlane.f32.xlu0 %v965
    %v967 = vpop.xlane.xlu0 %966
    %v968 = vrcp.pop 32.0
    %v969 = vmul.f32 32.0, %v968
    %v970 = vsub.f32 1.0, %v969
    %v971 = vmul.f32 %v968, %v970
    %v972 = vadd.f32 %v968, %v971
    %vm973 = vweird.f32 %v968
    %v974 = vsel %vm973, %v968, %v972
    %v975 = vmul.f32 %v964, %v974
    %v976 = vmul.f32 %v967, %v974
    %v977 = vsub.f32 %v960, %v975
    %v978 = vsub.f32 %v961, %v976
    %v979 = vmul.f32 %v977, %v977
    %v980 = vmul.f32 %v978, %v978
    %v981 = vsel %vm179, %v979, 0.0
    %982 = vadd.xlane.f32.xlu0 %v981
    %v983 = vpop.xlane.xlu0 %982
    %v984 = vsel %vm179, %v980, 0.0
    %985 = vadd.xlane.f32.xlu0 %v984
    %v986 = vpop.xlane.xlu0 %985
    %v987 = vmul.f32 %v983, %v974
    %v988 = vmul.f32 %v986, %v974
    %v989 = vadd.f32 %v987, 1e-12
    %v990 = vadd.f32 %v988, 1e-12
    %v991 = vrsqrt.pop %v989
    %v992 = vmul.f32 %v991, %v989
    %v993 = vmul.f32 %v992, %v991
    %v994 = vmul.f32 0.5, %v993
    %v995 = vsub.f32 1.5, %v994
    %v996 = vmul.f32 %v991, %v995
    %vm997 = vweird.f32 %v989
    %vm998 = vweird.f32 %v991
    %vm999 = vmor %vm997, %vm998
    %v1000 = vsel %vm999, %v991, %v996
    %v1001 = vrsqrt.pop %v990
    %v1002 = vmul.f32 %v1001, %v990
    %v1003 = vmul.f32 %v1002, %v1001
    %v1004 = vmul.f32 0.5, %v1003
    %v1005 = vsub.f32 1.5, %v1004
    %v1006 = vmul.f32 %v1001, %v1005
    %vm1007 = vweird.f32 %v990
    %vm1008 = vweird.f32 %v1001
    %vm1009 = vmor %vm1007, %vm1008
    %v1010 = vsel %vm1009, %v1001, %v1006
    %v1011 = vmul.f32 %v977, %v1000
    %v1012 = vmul.f32 %v978, %v1010
    %v1013 = vperm.slane %v149, 0
    %v1014 = vmul.f32 %v1011, %v1013
    %v1015 = vmul.f32 %v1012, %v1013
    %v1016 = vperm.slane %v150, 0
    %v1017 = vadd.f32 %v1014, %v1016
    %v1018 = vadd.f32 %v1015, %v1016
    %v1019 = vperm.slane %v155, 0
    %v1021 = vsel %vm179, %v1017, 0
    %v1024 = vsel %vm179, %v1018, 0
    %1026 = vmatpush.msra.mxu0 0.0
    %1027 = vmatpush.msra.mxu0 0.0
    %1028 = vmatpush.msra.mxu0 0.0
    %1029 = vmatpush.msra.mxu0 0.0
    %1030 = vmatpush.msra.mxu0 0.0
    %1031 = vmatpush.msra.mxu0 0.0
    %1032 = vmatpush.msra.mxu0 0.0
    %1033 = vmatpush.msra.mxu0 0.0
    %1034 = vmatpush.msra.mxu0 0.0
    %1035 = vmatpush.msra.mxu0 0.0
    %1036 = vmatpush.msra.mxu0 0.0
    %1037 = vmatpush.msra.mxu0 0.0
    %1038 = vmatpush.msra.mxu0 %v154
    %1039 = vmatpush.msra.mxu0 %v153
    %1040 = vmatpush.msra.mxu0 %v152
    %1041 = vmatpush.msra.mxu0 %v151
    %1042 = vmatmul.f32.gmra.mxu0 %v1021
    %v1043 = vpop.f32.mrf.mxu0
    %v1044 = vadd.f32 %v1019, %v1043
    %1045 = vmatmul.f32.gmra.mxu0 %v1024
    %v1046 = vpop.f32.mrf.mxu0
    %v1047 = vadd.f32 %v1019, %v1046
    %1048 = vdwg.mxu0
    %v1049 = vmul.f32 %v1044, 0.5
    %v1050 = vmul.f32 %v1047, 0.5
    %v1051 = vmul.f32 %v1044, 0.044715
    %v1052 = vmul.f32 %v1047, 0.044715
    %v1053 = vmul.f32 %v1051, %v1044
    %v1054 = vmul.f32 %v1052, %v1047
    %v1055 = vmul.f32 %v1053, %v1044
    %v1056 = vmul.f32 %v1054, %v1047
    %v1057 = vadd.f32 %v1044, %v1055
    %v1058 = vadd.f32 %v1047, %v1056
    %v1059 = vmul.f32 %v1057, 0.7978846
    %v1060 = vmul.f32 %v1058, 0.7978846
    %v1061 = vtanh.pop %v1059
    %v1062 = vtanh.pop %v1060
    %v1063 = vadd.f32 %v1061, 1.0
    %v1064 = vadd.f32 %v1062, 1.0
    %v1065 = vmul.f32 %v1049, %v1063
    %v1066 = vmul.f32 %v1050, %v1064
    %v1067 = vperm.slane %v164, 0
    %vm1068 = vcmask 523264
    %v1070 = vsel %vm1068, %v1065, 0
    %v1073 = vsel %vm1068, %v1066, 0
    %1075 = vmatpush.msra.mxu0 0.0
    %1076 = vmatpush.msra.mxu0 0.0
    %1077 = vmatpush.msra.mxu0 0.0
    %1078 = vmatpush.msra.mxu0 0.0
    %1079 = vmatpush.msra.mxu0 0.0
    %1080 = vmatpush.msra.mxu0 0.0
    %1081 = vmatpush.msra.mxu0 0.0
    %1082 = vmatpush.msra.mxu0 0.0
    %1083 = vmatpush.msra.mxu0 %v163
    %1084 = vmatpush.msra.mxu0 %v162
    %1085 = vmatpush.msra.mxu0 %v161
    %1086 = vmatpush.msra.mxu0 %v160
    %1087 = vmatpush.msra.mxu0 %v159
    %1088 = vmatpush.msra.mxu0 %v158
    %1089 = vmatpush.msra.mxu0 %v157
    %1090 = vmatpush.msra.mxu0 %v156
    %1091 = vmatmul.f32.gmra.mxu0 %v1070
    %v1092 = vpop.f32.mrf.mxu0
    %v1093 = vadd.f32 %v1067, %v1092
    %1094 = vmatmul.f32.gmra.mxu0 %v1073
    %v1095 = vpop.f32.mrf.mxu0
    %v1096 = vadd.f32 %v1067, %v1095
    %1097 = vdwg.mxu0
    %v1098 = vadd.f32 %v1093, %v1017
    %v1099 = vadd.f32 %v1096, %v1018
    %v1100 = vsel %vm179, %v1098, 0.0
    %1101 = vadd.xlane.f32.xlu0 %v1100
    %v1102 = vpop.xlane.xlu0 %1101
    %v1103 = vsel %vm179, %v1099, 0.0
    %1104 = vadd.xlane.f32.xlu0 %v1103
    %v1105 = vpop.xlane.xlu0 %1104
    %v1106 = vmul.f32 %v1102, %v974
    %v1107 = vmul.f32 %v1105, %v974
    %v1108 = vsub.f32 %v1098, %v1106
    %v1109 = vsub.f32 %v1099, %v1107
    %v1110 = vmul.f32 %v1108, %v1108
    %v1111 = vmul.f32 %v1109, %v1109
    %v1112 = vsel %vm179, %v1110, 0.0
    %1113 = vadd.xlane.f32.xlu0 %v1112
    %v1114 = vpop.xlane.xlu0 %1113
    %v1115 = vsel %vm179, %v1111, 0.0
    %1116 = vadd.xlane.f32.xlu0 %v1115
    %v1117 = vpop.xlane.xlu0 %1116
    %v1118 = vmul.f32 %v1114, %v974
    %v1119 = vmul.f32 %v1117, %v974
    %v1120 = vadd.f32 %v1118, 1e-12
    %v1121 = vadd.f32 %v1119, 1e-12
    %v1122 = vrsqrt.pop %v1120
    %v1123 = vmul.f32 %v1122, %v1120
    %v1124 = vmul.f32 %v1123, %v1122
    %v1125 = vmul.f32 0.5, %v1124
    %v1126 = vsub.f32 1.5, %v1125
    %v1127 = vmul.f32 %v1122, %v1126
    %vm1128 = vweird.f32 %v1120
    %vm1129 = vweird.f32 %v1122
    %vm1130 = vmor %vm1128, %vm1129
    %v1131 = vsel %vm1130, %v1122, %v1127
    %v1132 = vrsqrt.pop %v1121
    %v1133 = vmul.f32 %v1132, %v1121
    %v1134 = vmul.f32 %v1133, %v1132
    %v1135 = vmul.f32 0.5, %v1134
    %v1136 = vsub.f32 1.5, %v1135
    %v1137 = vmul.f32 %v1132, %v1136
    %vm1138 = vweird.f32 %v1121
    %vm1139 = vweird.f32 %v1132
    %vm1140 = vmor %vm1138, %vm1139
    %v1141 = vsel %vm1140, %v1132, %v1137
    %v1142 = vmul.f32 %v1108, %v1131
    %v1143 = vmul.f32 %v1109, %v1141
    %v1144 = vperm.slane %v165, 0
    %v1145 = vmul.f32 %v1142, %v1144
    %v1146 = vmul.f32 %v1143, %v1144
    %v1147 = vperm.slane %v166, 0
    %v1148 = vadd.f32 %v1145, %v1147
    %v1149 = vadd.f32 %v1146, %v1147
    %v1151 = vsel %vm179, %v1148, 0
    %1153 = vmatpush.msra.mxu0 0.0
    %1154 = vmatpush.msra.mxu0 0.0
    %1155 = vmatpush.msra.mxu0 0.0
    %1156 = vmatpush.msra.mxu0 0.0
    %1157 = vmatpush.msra.mxu0 0.0
    %1158 = vmatpush.msra.mxu0 0.0
    %1159 = vmatpush.msra.mxu0 0.0
    %1160 = vmatpush.msra.mxu0 0.0
    %1161 = vmatpush.msra.mxu0 0.0
    %1162 = vmatpush.msra.mxu0 0.0
    %1163 = vmatpush.msra.mxu0 0.0
    %1164 = vmatpush.msra.mxu0 0.0
    %1165 = vmatpush.msra.mxu0 %v127
    %1166 = vmatpush.msra.mxu0 %v126
    %1167 = vmatpush.msra.mxu0 %v125
    %1168 = vmatpush.msra.mxu0 %v124
    %1169 = vmatmul.f32.gmra.mxu0 %v1151
    %v1170 = vpop.f32.mrf.mxu0
    %v1171 = vadd.f32 %v171, %v1170
    %1172 = vdwg.mxu0
    %1173 = vmatpush.msra.mxu0 0.0
    %1174 = vmatpush.msra.mxu0 0.0
    %1175 = vmatpush.msra.mxu0 0.0
    %1176 = vmatpush.msra.mxu0 0.0
    %1177 = vmatpush.msra.mxu0 0.0
    %1178 = vmatpush.msra.mxu0 0.0
    %1179 = vmatpush.msra.mxu0 0.0
    %1180 = vmatpush.msra.mxu0 0.0
    %1181 = vmatpush.msra.mxu0 0.0
    %1182 = vmatpush.msra.mxu0 0.0
    %1183 = vmatpush.msra.mxu0 0.0
    %1184 = vmatpush.msra.mxu0 0.0
    %1185 = vmatpush.msra.mxu0 %v131
    %1186 = vmatpush.msra.mxu0 %v130
    %1187 = vmatpush.msra.mxu0 %v129
    %1188 = vmatpush.msra.mxu0 %v128
    %1189 = vmatmul.f32.gmra.mxu0 %v1151
    %v1190 = vpop.f32.mrf.mxu0
    %v1191 = vadd.f32 %v172, %v1190
    %1192 = vdwg.mxu0
    %1193 = vmatpush.msra.mxu0 0.0
    %1194 = vmatpush.msra.mxu0 0.0
    %1195 = vmatpush.msra.mxu0 0.0
    %1196 = vmatpush.msra.mxu0 0.0
    %1197 = vmatpush.msra.mxu0 0.0
    %1198 = vmatpush.msra.mxu0 0.0
    %1199 = vmatpush.msra.mxu0 0.0
    %1200 = vmatpush.msra.mxu0 0.0
    %1201 = vmatpush.msra.mxu0 0.0
    %1202 = vmatpush.msra.mxu0 0.0
    %1203 = vmatpush.msra.mxu0 0.0
    %1204 = vmatpush.msra.mxu0 0.0
    %1205 = vmatpush.msra.mxu0 %v135
    %1206 = vmatpush.msra.mxu0 %v134
    %1207 = vmatpush.msra.mxu0 %v133
    %1208 = vmatpush.msra.mxu0 %v132
    %1209 = vmatmul.f32.gmra.mxu0 %v1151
    %v1210 = vpop.f32.mrf.mxu0
    %v1211 = vadd.f32 %v173, %v1210
    %1212 = vdwg.mxu0
    %1213 = vmatpush.msra.mxu0 0.0
    %1214 = vmatpush.msra.mxu0 0.0
    %1215 = vmatpush.msra.mxu0 0.0
    %1216 = vmatpush.msra.mxu0 0.0
    %1217 = vmatpush.msra.mxu0 0.0
    %1218 = vmatpush.msra.mxu0 0.0
    %1219 = vmatpush.msra.mxu0 0.0
    %1220 = vmatpush.msra.mxu0 0.0
    %1221 = vmatpush.msra.mxu0 0.0
    %1222 = vmatpush.msra.mxu0 0.0
    %1223 = vmatpush.msra.mxu0 0.0
    %1224 = vmatpush.msra.mxu0 0.0
    %1225 = vmatpush.msra.mxu0 %v139
    %1226 = vmatpush.msra.mxu0 %v138
    %1227 = vmatpush.msra.mxu0 %v137
    %1228 = vmatpush.msra.mxu0 %v136
    %1229 = vmatmul.f32.gmra.mxu0 %v1151
    %v1230 = vpop.f32.mrf.mxu0
    %v1231 = vadd.f32 %v174, %v1230
    %1232 = vdwg.mxu0
    %v1234 = vsel %vm179, %v1149, 0
    %1236 = vmatpush.msra.mxu0 0.0
    %1237 = vmatpush.msra.mxu0 0.0
    %1238 = vmatpush.msra.mxu0 0.0
    %1239 = vmatpush.msra.mxu0 0.0
    %1240 = vmatpush.msra.mxu0 0.0
    %1241 = vmatpush.msra.mxu0 0.0
    %1242 = vmatpush.msra.mxu0 0.0
    %1243 = vmatpush.msra.mxu0 0.0
    %1244 = vmatpush.msra.mxu0 0.0
    %1245 = vmatpush.msra.mxu0 0.0
    %1246 = vmatpush.msra.mxu0 0.0
    %1247 = vmatpush.msra.mxu0 0.0
    %1248 = vmatpush.msra.mxu0 %v127
    %1249 = vmatpush.msra.mxu0 %v126
    %1250 = vmatpush.msra.mxu0 %v125
    %1251 = vmatpush.msra.mxu0 %v124
    %1252 = vmatmul.f32.gmra.mxu0 %v1234
    %v1253 = vpop.f32.mrf.mxu0
    %v1254 = vadd.f32 %v171, %v1253
    %1255 = vdwg.mxu0
    %1256 = vmatpush.msra.mxu0 0.0
    %1257 = vmatpush.msra.mxu0 0.0
    %1258 = vmatpush.msra.mxu0 0.0
    %1259 = vmatpush.msra.mxu0 0.0
    %1260 = vmatpush.msra.mxu0 0.0
    %1261 = vmatpush.msra.mxu0 0.0
    %1262 = vmatpush.msra.mxu0 0.0
    %1263 = vmatpush.msra.mxu0 0.0
    %1264 = vmatpush.msra.mxu0 0.0
    %1265 = vmatpush.msra.mxu0 0.0
    %1266 = vmatpush.msra.mxu0 0.0
    %1267 = vmatpush.msra.mxu0 0.0
    %1268 = vmatpush.msra.mxu0 %v131
    %1269 = vmatpush.msra.mxu0 %v130
    %1270 = vmatpush.msra.mxu0 %v129
    %1271 = vmatpush.msra.mxu0 %v128
    %1272 = vmatmul.f32.gmra.mxu0 %v1234
    %v1273 = vpop.f32.mrf.mxu0
    %v1274 = vadd.f32 %v172, %v1273
    %1275 = vdwg.mxu0
    %1276 = vmatpush.msra.mxu0 0.0
    %1277 = vmatpush.msra.mxu0 0.0
    %1278 = vmatpush.msra.mxu0 0.0
    %1279 = vmatpush.msra.mxu0 0.0
    %1280 = vmatpush.msra.mxu0 0.0
    %1281 = vmatpush.msra.mxu0 0.0
    %1282 = vmatpush.msra.mxu0 0.0
    %1283 = vmatpush.msra.mxu0 0.0
    %1284 = vmatpush.msra.mxu0 0.0
    %1285 = vmatpush.msra.mxu0 0.0
    %1286 = vmatpush.msra.mxu0 0.0
    %1287 = vmatpush.msra.mxu0 0.0
    %1288 = vmatpush.msra.mxu0 %v135
    %1289 = vmatpush.msra.mxu0 %v134
    %1290 = vmatpush.msra.mxu0 %v133
    %1291 = vmatpush.msra.mxu0 %v132
    %1292 = vmatmul.f32.gmra.mxu0 %v1234
    %v1293 = vpop.f32.mrf.mxu0
    %v1294 = vadd.f32 %v173, %v1293
    %1295 = vdwg.mxu0
    %1296 = vmatpush.msra.mxu0 0.0
    %1297 = vmatpush.msra.mxu0 0.0
    %1298 = vmatpush.msra.mxu0 0.0
    %1299 = vmatpush.msra.mxu0 0.0
    %1300 = vmatpush.msra.mxu0 0.0
    %1301 = vmatpush.msra.mxu0 0.0
    %1302 = vmatpush.msra.mxu0 0.0
    %1303 = vmatpush.msra.mxu0 0.0
    %1304 = vmatpush.msra.mxu0 0.0
    %1305 = vmatpush.msra.mxu0 0.0
    %1306 = vmatpush.msra.mxu0 0.0
    %1307 = vmatpush.msra.mxu0 0.0
    %1308 = vmatpush.msra.mxu0 %v139
    %1309 = vmatpush.msra.mxu0 %v138
    %1310 = vmatpush.msra.mxu0 %v137
    %1311 = vmatpush.msra.mxu0 %v136
    %1312 = vmatmul.f32.gmra.mxu0 %v1234
    %v1313 = vpop.f32.mrf.mxu0
    %v1314 = vadd.f32 %v174, %v1313
    %1315 = vdwg.mxu0
    %1317 = vrot.lane.b32.xlu0 %v1171, 120
    %v1318 = vpop.permute.xlu0 %1317
    %v1319 = vsel %vm349, %v1171, 0
    %v1321 = vsel %vm349, %v1318, 0
    %1323 = vmatpush.xpose.msra.mxu0 0.0
    %1324 = vmatpush.xpose.msra.mxu0 0.0
    %1325 = vmatpush.xpose.msra.mxu0 0.0
    %1326 = vmatpush.xpose.msra.mxu0 0.0
    %1327 = vmatpush.xpose.msra.mxu0 0.0
    %1328 = vmatpush.xpose.msra.mxu0 0.0
    %1329 = vmatpush.xpose.msra.mxu0 0.0
    %1330 = vmatpush.xpose.msra.mxu0 0.0
    %1331 = vmatpush.xpose.msra.mxu0 0.0
    %1332 = vmatpush.xpose.msra.mxu0 0.0
    %1333 = vmatpush.xpose.msra.mxu0 0.0
    %1334 = vmatpush.xpose.msra.mxu0 0.0
    %1335 = vmatpush.xpose.msra.mxu0 0.0
    %1336 = vmatpush.xpose.msra.mxu0 0.0
    %1337 = vmatpush.xpose.msra.mxu0 0.0
    %1338 = vmatpush.xpose.msra.mxu0 %v1321
    %1339 = vmatmul.f32.gmra.mxu0 %v1319
    %v1340 = vpop.f32.mrf.mxu0
    %v1341 = vadd.f32 0.0, %v1340
    %1342 = vdwg.mxu0
    %1344 = vrot.lane.b32.xlu0 %v1191, 120
    %v1345 = vpop.permute.xlu0 %1344
    %v1346 = vsel %vm349, %v1191, 0
    %v1348 = vsel %vm349, %v1345, 0
    %1350 = vmatpush.xpose.msra.mxu0 0.0
    %1351 = vmatpush.xpose.msra.mxu0 0.0
    %1352 = vmatpush.xpose.msra.mxu0 0.0
    %1353 = vmatpush.xpose.msra.mxu0 0.0
    %1354 = vmatpush.xpose.msra.mxu0 0.0
    %1355 = vmatpush.xpose.msra.mxu0 0.0
    %1356 = vmatpush.xpose.msra.mxu0 0.0
    %1357 = vmatpush.xpose.msra.mxu0 0.0
    %1358 = vmatpush.xpose.msra.mxu0 0.0
    %1359 = vmatpush.xpose.msra.mxu0 0.0
    %1360 = vmatpush.xpose.msra.mxu0 0.0
    %1361 = vmatpush.xpose.msra.mxu0 0.0
    %1362 = vmatpush.xpose.msra.mxu0 0.0
    %1363 = vmatpush.xpose.msra.mxu0 0.0
    %1364 = vmatpush.xpose.msra.mxu0 0.0
    %1365 = vmatpush.xpose.msra.mxu0 %v1348
    %1366 = vmatmul.f32.gmra.mxu0 %v1346
    %v1367 = vpop.f32.mrf.mxu0
    %v1368 = vadd.f32 0.0, %v1367
    %1369 = vdwg.mxu0
    %1371 = vrot.lane.b32.xlu0 %v1211, 120
    %v1372 = vpop.permute.xlu0 %1371
    %v1373 = vsel %vm349, %v1211, 0
    %v1375 = vsel %vm349, %v1372, 0
    %1377 = vmatpush.xpose.msra.mxu0 0.0
    %1378 = vmatpush.xpose.msra.mxu0 0.0
    %1379 = vmatpush.xpose.msra.mxu0 0.0
    %1380 = vmatpush.xpose.msra.mxu0 0.0
    %1381 = vmatpush.xpose.msra.mxu0 0.0
    %1382 = vmatpush.xpose.msra.mxu0 0.0
    %1383 = vmatpush.xpose.msra.mxu0 0.0
    %1384 = vmatpush.xpose.msra.mxu0 0.0
    %1385 = vmatpush.xpose.msra.mxu0 0.0
    %1386 = vmatpush.xpose.msra.mxu0 0.0
    %1387 = vmatpush.xpose.msra.mxu0 0.0
    %1388 = vmatpush.xpose.msra.mxu0 0.0
    %1389 = vmatpush.xpose.msra.mxu0 0.0
    %1390 = vmatpush.xpose.msra.mxu0 0.0
    %1391 = vmatpush.xpose.msra.mxu0 0.0
    %1392 = vmatpush.xpose.msra.mxu0 %v1375
    %1393 = vmatmul.f32.gmra.mxu0 %v1373
    %v1394 = vpop.f32.mrf.mxu0
    %v1395 = vadd.f32 0.0, %v1394
    %1396 = vdwg.mxu0
    %1398 = vrot.lane.b32.xlu0 %v1231, 120
    %v1399 = vpop.permute.xlu0 %1398
    %v1400 = vsel %vm349, %v1231, 0
    %v1402 = vsel %vm349, %v1399, 0
    %1404 = vmatpush.xpose.msra.mxu0 0.0
    %1405 = vmatpush.xpose.msra.mxu0 0.0
    %1406 = vmatpush.xpose.msra.mxu0 0.0
    %1407 = vmatpush.xpose.msra.mxu0 0.0
    %1408 = vmatpush.xpose.msra.mxu0 0.0
    %1409 = vmatpush.xpose.msra.mxu0 0.0
    %1410 = vmatpush.xpose.msra.mxu0 0.0
    %1411 = vmatpush.xpose.msra.mxu0 0.0
    %1412 = vmatpush.xpose.msra.mxu0 0.0
    %1413 = vmatpush.xpose.msra.mxu0 0.0
    %1414 = vmatpush.xpose.msra.mxu0 0.0
    %1415 = vmatpush.xpose.msra.mxu0 0.0
    %1416 = vmatpush.xpose.msra.mxu0 0.0
    %1417 = vmatpush.xpose.msra.mxu0 0.0
    %1418 = vmatpush.xpose.msra.mxu0 0.0
    %1419 = vmatpush.xpose.msra.mxu0 %v1402
    %1420 = vmatmul.f32.gmra.mxu0 %v1400
    %v1421 = vpop.f32.mrf.mxu0
    %v1422 = vadd.f32 0.0, %v1421
    %1423 = vdwg.mxu0
    %1425 = vrot.lane.b32.xlu0 %v1254, 120
    %v1426 = vpop.permute.xlu0 %1425
    %v1427 = vsel %vm349, %v1254, 0
    %v1429 = vsel %vm349, %v1426, 0
    %1431 = vmatpush.xpose.msra.mxu0 0.0
    %1432 = vmatpush.xpose.msra.mxu0 0.0
    %1433 = vmatpush.xpose.msra.mxu0 0.0
    %1434 = vmatpush.xpose.msra.mxu0 0.0
    %1435 = vmatpush.xpose.msra.mxu0 0.0
    %1436 = vmatpush.xpose.msra.mxu0 0.0
    %1437 = vmatpush.xpose.msra.mxu0 0.0
    %1438 = vmatpush.xpose.msra.mxu0 0.0
    %1439 = vmatpush.xpose.msra.mxu0 0.0
    %1440 = vmatpush.xpose.msra.mxu0 0.0
    %1441 = vmatpush.xpose.msra.mxu0 0.0
    %1442 = vmatpush.xpose.msra.mxu0 0.0
    %1443 = vmatpush.xpose.msra.mxu0 0.0
    %1444 = vmatpush.xpose.msra.mxu0 0.0
    %1445 = vmatpush.xpose.msra.mxu0 0.0
    %1446 = vmatpush.xpose.msra.mxu0 %v1429
    %1447 = vmatmul.f32.gmra.mxu0 %v1427
    %v1448 = vpop.f32.mrf.mxu0
    %v1449 = vadd.f32 0.0, %v1448
    %1450 = vdwg.mxu0
    %1452 = vrot.lane.b32.xlu0 %v1274, 120
    %v1453 = vpop.permute.xlu0 %1452
    %v1454 = vsel %vm349, %v1274, 0
    %v1456 = vsel %vm349, %v1453, 0
    %1458 = vmatpush.xpose.msra.mxu0 0.0
    %1459 = vmatpush.xpose.msra.mxu0 0.0
    %1460 = vmatpush.xpose.msra.mxu0 0.0
    %1461 = vmatpush.xpose.msra.mxu0 0.0
    %1462 = vmatpush.xpose.msra.mxu0 0.0
    %1463 = vmatpush.xpose.msra.mxu0 0.0
    %1464 = vmatpush.xpose.msra.mxu0 0.0
    %1465 = vmatpush.xpose.msra.mxu0 0.0
    %1466 = vmatpush.xpose.msra.mxu0 0.0
    %1467 = vmatpush.xpose.msra.mxu0 0.0
    %1468 = vmatpush.xpose.msra.mxu0 0.0
    %1469 = vmatpush.xpose.msra.mxu0 0.0
    %1470 = vmatpush.xpose.msra.mxu0 0.0
    %1471 = vmatpush.xpose.msra.mxu0 0.0
    %1472 = vmatpush.xpose.msra.mxu0 0.0
    %1473 = vmatpush.xpose.msra.mxu0 %v1456
    %1474 = vmatmul.f32.gmra.mxu0 %v1454
    %v1475 = vpop.f32.mrf.mxu0
    %v1476 = vadd.f32 0.0, %v1475
    %1477 = vdwg.mxu0
    %1479 = vrot.lane.b32.xlu0 %v1294, 120
    %v1480 = vpop.permute.xlu0 %1479
    %v1481 = vsel %vm349, %v1294, 0
    %v1483 = vsel %vm349, %v1480, 0
    %1485 = vmatpush.xpose.msra.mxu0 0.0
    %1486 = vmatpush.xpose.msra.mxu0 0.0
    %1487 = vmatpush.xpose.msra.mxu0 0.0
    %1488 = vmatpush.xpose.msra.mxu0 0.0
    %1489 = vmatpush.xpose.msra.mxu0 0.0
    %1490 = vmatpush.xpose.msra.mxu0 0.0
    %1491 = vmatpush.xpose.msra.mxu0 0.0
    %1492 = vmatpush.xpose.msra.mxu0 0.0
    %1493 = vmatpush.xpose.msra.mxu0 0.0
    %1494 = vmatpush.xpose.msra.mxu0 0.0
    %1495 = vmatpush.xpose.msra.mxu0 0.0
    %1496 = vmatpush.xpose.msra.mxu0 0.0
    %1497 = vmatpush.xpose.msra.mxu0 0.0
    %1498 = vmatpush.xpose.msra.mxu0 0.0
    %1499 = vmatpush.xpose.msra.mxu0 0.0
    %1500 = vmatpush.xpose.msra.mxu0 %v1483
    %1501 = vmatmul.f32.gmra.mxu0 %v1481
    %v1502 = vpop.f32.mrf.mxu0
    %v1503 = vadd.f32 0.0, %v1502
    %1504 = vdwg.mxu0
    %1506 = vrot.lane.b32.xlu0 %v1314, 120
    %v1507 = vpop.permute.xlu0 %1506
    %v1508 = vsel %vm349, %v1314, 0
    %v1510 = vsel %vm349, %v1507, 0
    %1512 = vmatpush.xpose.msra.mxu0 0.0
    %1513 = vmatpush.xpose.msra.mxu0 0.0
    %1514 = vmatpush.xpose.msra.mxu0 0.0
    %1515 = vmatpush.xpose.msra.mxu0 0.0
    %1516 = vmatpush.xpose.msra.mxu0 0.0
    %1517 = vmatpush.xpose.msra.mxu0 0.0
    %1518 = vmatpush.xpose.msra.mxu0 0.0
    %1519 = vmatpush.xpose.msra.mxu0 0.0
    %1520 = vmatpush.xpose.msra.mxu0 0.0
    %1521 = vmatpush.xpose.msra.mxu0 0.0
    %1522 = vmatpush.xpose.msra.mxu0 0.0
    %1523 = vmatpush.xpose.msra.mxu0 0.0
    %1524 = vmatpush.xpose.msra.mxu0 0.0
    %1525 = vmatpush.xpose.msra.mxu0 0.0
    %1526 = vmatpush.xpose.msra.mxu0 0.0
    %1527 = vmatpush.xpose.msra.mxu0 %v1510
    %1528 = vmatmul.f32.gmra.mxu0 %v1508
    %v1529 = vpop.f32.mrf.mxu0
    %v1530 = vadd.f32 0.0, %v1529
    %1531 = vdwg.mxu0
    %v1532 = vmul.f32 %v1341, 0.35355338
    %v1533 = vmul.f32 %v1368, 0.35355338
    %v1534 = vmul.f32 %v1395, 0.35355338
    %v1535 = vmul.f32 %v1422, 0.35355338
    %v1536 = vmul.f32 %v1449, 0.35355338
    %v1537 = vmul.f32 %v1476, 0.35355338
    %v1538 = vmul.f32 %v1503, 0.35355338
    %v1539 = vmul.f32 %v1530, 0.35355338
    %v1540 = vadd.f32 %v1532, %v579
    %v1541 = vadd.f32 %v1533, %v580
    %v1542 = vadd.f32 %v1534, %v581
    %v1543 = vadd.f32 %v1535, %v582
    %v1544 = vadd.f32 %v1536, %v583
    %v1545 = vadd.f32 %v1537, %v584
    %v1546 = vadd.f32 %v1538, %v585
    %v1547 = vadd.f32 %v1539, %v586
    %v1548 = vsel %vm349, %v1540, -inf
    %1549 = vmax.xlane.f32.xlu0 %v1548
    %v1550 = vpop.xlane.xlu0 %1549
    %v1551 = vsel %vm349, %v1541, -inf
    %1552 = vmax.xlane.f32.xlu0 %v1551
    %v1553 = vpop.xlane.xlu0 %1552
    %v1554 = vsel %vm349, %v1542, -inf
    %1555 = vmax.xlane.f32.xlu0 %v1554
    %v1556 = vpop.xlane.xlu0 %1555
    %v1557 = vsel %vm349, %v1543, -inf
    %1558 = vmax.xlane.f32.xlu0 %v1557
    %v1559 = vpop.xlane.xlu0 %1558
    %v1560 = vsel %vm349, %v1544, -inf
    %1561 = vmax.xlane.f32.xlu0 %v1560
    %v1562 = vpop.xlane.xlu0 %1561
    %v1563 = vsel %vm349, %v1545, -inf
    %1564 = vmax.xlane.f32.xlu0 %v1563
    %v1565 = vpop.xlane.xlu0 %1564
    %v1566 = vsel %vm349, %v1546, -inf
    %1567 = vmax.xlane.f32.xlu0 %v1566
    %v1568 = vpop.xlane.xlu0 %1567
    %v1569 = vsel %vm349, %v1547, -inf
    %1570 = vmax.xlane.f32.xlu0 %v1569
    %v1571 = vpop.xlane.xlu0 %1570
    %v1572 = vsub.f32 %v1540, %v1550
    %v1573 = vsub.f32 %v1541, %v1553
    %v1574 = vsub.f32 %v1542, %v1556
    %v1575 = vsub.f32 %v1543, %v1559
    %v1576 = vsub.f32 %v1544, %v1562
    %v1577 = vsub.f32 %v1545, %v1565
    %v1578 = vsub.f32 %v1546, %v1568
    %v1579 = vsub.f32 %v1547, %v1571
    %v1580 = vmul.f32 %v1572, 1.442695
    %v1581 = vpow.pop %v1580
    %v1582 = vmul.f32 %v1573, 1.442695
    %v1583 = vpow.pop %v1582
    %v1584 = vmul.f32 %v1574, 1.442695
    %v1585 = vpow.pop %v1584
    %v1586 = vmul.f32 %v1575, 1.442695
    %v1587 = vpow.pop %v1586
    %v1588 = vmul.f32 %v1576, 1.442695
    %v1589 = vpow.pop %v1588
    %v1590 = vmul.f32 %v1577, 1.442695
    %v1591 = vpow.pop %v1590
    %v1592 = vmul.f32 %v1578, 1.442695
    %v1593 = vpow.pop %v1592
    %v1594 = vmul.f32 %v1579, 1.442695
    %v1595 = vpow.pop %v1594
    %v1596 = vsel %vm349, %v1581, 0.0
    %1597 = vadd.xlane.f32.xlu0 %v1596
    %v1598 = vpop.xlane.xlu0 %1597
    %v1599 = vsel %vm349, %v1583, 0.0
    %1600 = vadd.xlane.f32.xlu0 %v1599
    %v1601 = vpop.xlane.xlu0 %1600
    %v1602 = vsel %vm349, %v1585, 0.0
    %1603 = vadd.xlane.f32.xlu0 %v1602
    %v1604 = vpop.xlane.xlu0 %1603
    %v1605 = vsel %vm349, %v1587, 0.0
    %1606 = vadd.xlane.f32.xlu0 %v1605
    %v1607 = vpop.xlane.xlu0 %1606
    %v1608 = vsel %vm349, %v1589, 0.0
    %1609 = vadd.xlane.f32.xlu0 %v1608
    %v1610 = vpop.xlane.xlu0 %1609
    %v1611 = vsel %vm349, %v1591, 0.0
    %1612 = vadd.xlane.f32.xlu0 %v1611
    %v1613 = vpop.xlane.xlu0 %1612
    %v1614 = vsel %vm349, %v1593, 0.0
    %1615 = vadd.xlane.f32.xlu0 %v1614
    %v1616 = vpop.xlane.xlu0 %1615
    %v1617 = vsel %vm349, %v1595, 0.0
    %1618 = vadd.xlane.f32.xlu0 %v1617
    %v1619 = vpop.xlane.xlu0 %1618
    %v1620 = vrcp.pop %v1598
    %v1621 = vrcp.pop %v1601
    %v1622 = vrcp.pop %v1604
    %v1623 = vrcp.pop %v1607
    %v1624 = vrcp.pop %v1610
    %v1625 = vrcp.pop %v1613
    %v1626 = vrcp.pop %v1616
    %v1627 = vrcp.pop %v1619
    %v1628 = vmul.f32 %v1581, %v1620
    %v1629 = vmul.f32 %v1583, %v1621
    %v1630 = vmul.f32 %v1585, %v1622
    %v1631 = vmul.f32 %v1587, %v1623
    %v1632 = vmul.f32 %v1589, %v1624
    %v1633 = vmul.f32 %v1591, %v1625
    %v1634 = vmul.f32 %v1593, %v1626
    %v1635 = vmul.f32 %v1595, %v1627
    %1636 = vrot.lane.b32.xlu0 %v1171, 112
    %v1637 = vpop.permute.xlu0 %1636
    %v1640 = vsel %vm349, %v1628, 0
    %1642 = vmatpush.msra.mxu0 0.0
    %1643 = vmatpush.msra.mxu0 0.0
    %1644 = vmatpush.msra.mxu0 0.0
    %1645 = vmatpush.msra.mxu0 0.0
    %1646 = vmatpush.msra.mxu0 0.0
    %1647 = vmatpush.msra.mxu0 0.0
    %1648 = vmatpush.msra.mxu0 0.0
    %1649 = vmatpush.msra.mxu0 0.0
    %1650 = vmatpush.msra.mxu0 0.0
    %1651 = vmatpush.msra.mxu0 0.0
    %1652 = vmatpush.msra.mxu0 0.0
    %1653 = vmatpush.msra.mxu0 0.0
    %1654 = vmatpush.msra.mxu0 0.0
    %1655 = vmatpush.msra.mxu0 0.0
    %1656 = vmatpush.msra.mxu0 0.0
    %1657 = vmatpush.msra.mxu0 %v1637
    %1658 = vmatmul.f32.gmra.mxu0 %v1640
    %v1659 = vpop.f32.mrf.mxu0
    %v1660 = vadd.f32 0.0, %v1659
    %1661 = vdwg.mxu0
    %1662 = vrot.lane.b32.xlu0 %v1191, 112
    %v1663 = vpop.permute.xlu0 %1662
    %v1666 = vsel %vm349, %v1629, 0
    %1668 = vmatpush.msra.mxu0 0.0
    %1669 = vmatpush.msra.mxu0 0.0
    %1670 = vmatpush.msra.mxu0 0.0
    %1671 = vmatpush.msra.mxu0 0.0
    %1672 = vmatpush.msra.mxu0 0.0
    %1673 = vmatpush.msra.mxu0 0.0
    %1674 = vmatpush.msra.mxu0 0.0
    %1675 = vmatpush.msra.mxu0 0.0
    %1676 = vmatpush.msra.mxu0 0.0
    %1677 = vmatpush.msra.mxu0 0.0
    %1678 = vmatpush.msra.mxu0 0.0
    %1679 = vmatpush.msra.mxu0 0.0
    %1680 = vmatpush.msra.mxu0 0.0
    %1681 = vmatpush.msra.mxu0 0.0
    %1682 = vmatpush.msra.mxu0 0.0
    %1683 = vmatpush.msra.mxu0 %v1663
    %1684 = vmatmul.f32.gmra.mxu0 %v1666
    %v1685 = vpop.f32.mrf.mxu0
    %v1686 = vadd.f32 0.0, %v1685
    %1687 = vdwg.mxu0
    %1688 = vrot.lane.b32.xlu0 %v1211, 112
    %v1689 = vpop.permute.xlu0 %1688
    %v1692 = vsel %vm349, %v1630, 0
    %1694 = vmatpush.msra.mxu0 0.0
    %1695 = vmatpush.msra.mxu0 0.0
    %1696 = vmatpush.msra.mxu0 0.0
    %1697 = vmatpush.msra.mxu0 0.0
    %1698 = vmatpush.msra.mxu0 0.0
    %1699 = vmatpush.msra.mxu0 0.0
    %1700 = vmatpush.msra.mxu0 0.0
    %1701 = vmatpush.msra.mxu0 0.0
    %1702 = vmatpush.msra.mxu0 0.0
    %1703 = vmatpush.msra.mxu0 0.0
    %1704 = vmatpush.msra.mxu0 0.0
    %1705 = vmatpush.msra.mxu0 0.0
    %1706 = vmatpush.msra.mxu0 0.0
    %1707 = vmatpush.msra.mxu0 0.0
    %1708 = vmatpush.msra.mxu0 0.0
    %1709 = vmatpush.msra.mxu0 %v1689
    %1710 = vmatmul.f32.gmra.mxu0 %v1692
    %v1711 = vpop.f32.mrf.mxu0
    %v1712 = vadd.f32 0.0, %v1711
    %1713 = vdwg.mxu0
    %1714 = vrot.lane.b32.xlu0 %v1231, 112
    %v1715 = vpop.permute.xlu0 %1714
    %v1718 = vsel %vm349, %v1631, 0
    %1720 = vmatpush.msra.mxu0 0.0
    %1721 = vmatpush.msra.mxu0 0.0
    %1722 = vmatpush.msra.mxu0 0.0
    %1723 = vmatpush.msra.mxu0 0.0
    %1724 = vmatpush.msra.mxu0 0.0
    %1725 = vmatpush.msra.mxu0 0.0
    %1726 = vmatpush.msra.mxu0 0.0
    %1727 = vmatpush.msra.mxu0 0.0
    %1728 = vmatpush.msra.mxu0 0.0
    %1729 = vmatpush.msra.mxu0 0.0
    %1730 = vmatpush.msra.mxu0 0.0
    %1731 = vmatpush.msra.mxu0 0.0
    %1732 = vmatpush.msra.mxu0 0.0
    %1733 = vmatpush.msra.mxu0 0.0
    %1734 = vmatpush.msra.mxu0 0.0
    %1735 = vmatpush.msra.mxu0 %v1715
    %1736 = vmatmul.f32.gmra.mxu0 %v1718
    %v1737 = vpop.f32.mrf.mxu0
    %v1738 = vadd.f32 0.0, %v1737
    %1739 = vdwg.mxu0
    %1740 = vrot.lane.b32.xlu0 %v1254, 112
    %v1741 = vpop.permute.xlu0 %1740
    %v1744 = vsel %vm349, %v1632, 0
    %1746 = vmatpush.msra.mxu0 0.0
    %1747 = vmatpush.msra.mxu0 0.0
    %1748 = vmatpush.msra.mxu0 0.0
    %1749 = vmatpush.msra.mxu0 0.0
    %1750 = vmatpush.msra.mxu0 0.0
    %1751 = vmatpush.msra.mxu0 0.0
    %1752 = vmatpush.msra.mxu0 0.0
    %1753 = vmatpush.msra.mxu0 0.0
    %1754 = vmatpush.msra.mxu0 0.0
    %1755 = vmatpush.msra.mxu0 0.0
    %1756 = vmatpush.msra.mxu0 0.0
    %1757 = vmatpush.msra.mxu0 0.0
    %1758 = vmatpush.msra.mxu0 0.0
    %1759 = vmatpush.msra.mxu0 0.0
    %1760 = vmatpush.msra.mxu0 0.0
    %1761 = vmatpush.msra.mxu0 %v1741
    %1762 = vmatmul.f32.gmra.mxu0 %v1744
    %v1763 = vpop.f32.mrf.mxu0
    %v1764 = vadd.f32 0.0, %v1763
    %1765 = vdwg.mxu0
    %1766 = vrot.lane.b32.xlu0 %v1274, 112
    %v1767 = vpop.permute.xlu0 %1766
    %v1770 = vsel %vm349, %v1633, 0
    %1772 = vmatpush.msra.mxu0 0.0
    %1773 = vmatpush.msra.mxu0 0.0
    %1774 = vmatpush.msra.mxu0 0.0
    %1775 = vmatpush.msra.mxu0 0.0
    %1776 = vmatpush.msra.mxu0 0.0
    %1777 = vmatpush.msra.mxu0 0.0
    %1778 = vmatpush.msra.mxu0 0.0
    %1779 = vmatpush.msra.mxu0 0.0
    %1780 = vmatpush.msra.mxu0 0.0
    %1781 = vmatpush.msra.mxu0 0.0
    %1782 = vmatpush.msra.mxu0 0.0
    %1783 = vmatpush.msra.mxu0 0.0
    %1784 = vmatpush.msra.mxu0 0.0
    %1785 = vmatpush.msra.mxu0 0.0
    %1786 = vmatpush.msra.mxu0 0.0
    %1787 = vmatpush.msra.mxu0 %v1767
    %1788 = vmatmul.f32.gmra.mxu0 %v1770
    %v1789 = vpop.f32.mrf.mxu0
    %v1790 = vadd.f32 0.0, %v1789
    %1791 = vdwg.mxu0
    %1792 = vrot.lane.b32.xlu0 %v1294, 112
    %v1793 = vpop.permute.xlu0 %1792
    %v1796 = vsel %vm349, %v1634, 0
    %1798 = vmatpush.msra.mxu0 0.0
    %1799 = vmatpush.msra.mxu0 0.0
    %1800 = vmatpush.msra.mxu0 0.0
    %1801 = vmatpush.msra.mxu0 0.0
    %1802 = vmatpush.msra.mxu0 0.0
    %1803 = vmatpush.msra.mxu0 0.0
    %1804 = vmatpush.msra.mxu0 0.0
    %1805 = vmatpush.msra.mxu0 0.0
    %1806 = vmatpush.msra.mxu0 0.0
    %1807 = vmatpush.msra.mxu0 0.0
    %1808 = vmatpush.msra.mxu0 0.0
    %1809 = vmatpush.msra.mxu0 0.0
    %1810 = vmatpush.msra.mxu0 0.0
    %1811 = vmatpush.msra.mxu0 0.0
    %1812 = vmatpush.msra.mxu0 0.0
    %1813 = vmatpush.msra.mxu0 %v1793
    %1814 = vmatmul.f32.gmra.mxu0 %v1796
    %v1815 = vpop.f32.mrf.mxu0
    %v1816 = vadd.f32 0.0, %v1815
    %1817 = vdwg.mxu0
    %1818 = vrot.lane.b32.xlu0 %v1314, 112
    %v1819 = vpop.permute.xlu0 %1818
    %v1822 = vsel %vm349, %v1635, 0
    %1824 = vmatpush.msra.mxu0 0.0
    %1825 = vmatpush.msra.mxu0 0.0
    %1826 = vmatpush.msra.mxu0 0.0
    %1827 = vmatpush.msra.mxu0 0.0
    %1828 = vmatpush.msra.mxu0 0.0
    %1829 = vmatpush.msra.mxu0 0.0
    %1830 = vmatpush.msra.mxu0 0.0
    %1831 = vmatpush.msra.mxu0 0.0
    %1832 = vmatpush.msra.mxu0 0.0
    %1833 = vmatpush.msra.mxu0 0.0
    %1834 = vmatpush.msra.mxu0 0.0
    %1835 = vmatpush.msra.mxu0 0.0
    %1836 = vmatpush.msra.mxu0 0.0
    %1837 = vmatpush.msra.mxu0 0.0
    %1838 = vmatpush.msra.mxu0 0.0
    %1839 = vmatpush.msra.mxu0 %v1819
    %1840 = vmatmul.f32.gmra.mxu0 %v1822
    %v1841 = vpop.f32.mrf.mxu0
    %v1842 = vadd.f32 0.0, %v1841
    %1843 = vdwg.mxu0
    %1845 = vrot.lane.b32.xlu0 %v1686, 8
    %v1846 = vpop.permute.xlu0 %1845
    %1849 = vrot.lane.b32.xlu0 %v1712, 16
    %v1850 = vpop.permute.xlu0 %1849
    %1853 = vrot.lane.b32.xlu0 %v1738, 24
    %v1854 = vpop.permute.xlu0 %1853
    %v1856 = vsel %vm349, %v1660, %v1846
    %v1857 = vsel %vm25, %v1856, %v1850
    %v1858 = vsel %vm913, %v1857, %v1854
    %1860 = vrot.lane.b32.xlu0 %v1790, 8
    %v1861 = vpop.permute.xlu0 %1860
    %1864 = vrot.lane.b32.xlu0 %v1816, 16
    %v1865 = vpop.permute.xlu0 %1864
    %1868 = vrot.lane.b32.xlu0 %v1842, 24
    %v1869 = vpop.permute.xlu0 %1868
    %v1871 = vsel %vm349, %v1764, %v1861
    %v1872 = vsel %vm25, %v1871, %v1865
    %v1873 = vsel %vm913, %v1872, %v1869
    %v1875 = vsel %vm179, %v1858, 0
    %v1878 = vsel %vm179, %v1873, 0
    %1880 = vmatpush.msra.mxu0 0.0
    %1881 = vmatpush.msra.mxu0 0.0
    %1882 = vmatpush.msra.mxu0 0.0
    %1883 = vmatpush.msra.mxu0 0.0
    %1884 = vmatpush.msra.mxu0 0.0
    %1885 = vmatpush.msra.mxu0 0.0
    %1886 = vmatpush.msra.mxu0 0.0
    %1887 = vmatpush.msra.mxu0 0.0
    %1888 = vmatpush.msra.mxu0 0.0
    %1889 = vmatpush.msra.mxu0 0.0
    %1890 = vmatpush.msra.mxu0 0.0
    %1891 = vmatpush.msra.mxu0 0.0
    %1892 = vmatpush.msra.mxu0 %v147
    %1893 = vmatpush.msra.mxu0 %v146
    %1894 = vmatpush.msra.mxu0 %v145
    %1895 = vmatpush.msra.mxu0 %v144
    %1896 = vmatmul.f32.gmra.mxu0 %v1875
    %v1897 = vpop.f32.mrf.mxu0
    %v1898 = vadd.f32 %v930, %v1897
    %1899 = vmatmul.f32.gmra.mxu0 %v1878
    %v1900 = vpop.f32.mrf.mxu0
    %v1901 = vadd.f32 %v930, %v1900
    %1902 = vdwg.mxu0
    %v1903 = vadd.f32 %v1898, %v1148
    %v1904 = vadd.f32 %v1901, %v1149
    %v1905 = vsel %vm179, %v1903, 0.0
    %1906 = vadd.xlane.f32.xlu0 %v1905
    %v1907 = vpop.xlane.xlu0 %1906
    %v1908 = vsel %vm179, %v1904, 0.0
    %1909 = vadd.xlane.f32.xlu0 %v1908
    %v1910 = vpop.xlane.xlu0 %1909
    %v1911 = vmul.f32 %v1907, %v974
    %v1912 = vmul.f32 %v1910, %v974
    %v1913 = vsub.f32 %v1903, %v1911
    %v1914 = vsub.f32 %v1904, %v1912
    %v1915 = vmul.f32 %v1913, %v1913
    %v1916 = vmul.f32 %v1914, %v1914
    %v1917 = vsel %vm179, %v1915, 0.0
    %1918 = vadd.xlane.f32.xlu0 %v1917
    %v1919 = vpop.xlane.xlu0 %1918
    %v1920 = vsel %vm179, %v1916, 0.0
    %1921 = vadd.xlane.f32.xlu0 %v1920
    %v1922 = vpop.xlane.xlu0 %1921
    %v1923 = vmul.f32 %v1919, %v974
    %v1924 = vmul.f32 %v1922, %v974
    %v1925 = vadd.f32 %v1923, 1e-12
    %v1926 = vadd.f32 %v1924, 1e-12
    %v1927 = vrsqrt.pop %v1925
    %v1928 = vmul.f32 %v1927, %v1925
    %v1929 = vmul.f32 %v1928, %v1927
    %v1930 = vmul.f32 0.5, %v1929
    %v1931 = vsub.f32 1.5, %v1930
    %v1932 = vmul.f32 %v1927, %v1931
    %vm1933 = vweird.f32 %v1925
    %vm1934 = vweird.f32 %v1927
    %vm1935 = vmor %vm1933, %vm1934
    %v1936 = vsel %vm1935, %v1927, %v1932
    %v1937 = vrsqrt.pop %v1926
    %v1938 = vmul.f32 %v1937, %v1926
    %v1939 = vmul.f32 %v1938, %v1937
    %v1940 = vmul.f32 0.5, %v1939
    %v1941 = vsub.f32 1.5, %v1940
    %v1942 = vmul.f32 %v1937, %v1941
    %vm1943 = vweird.f32 %v1926
    %vm1944 = vweird.f32 %v1937
    %vm1945 = vmor %vm1943, %vm1944
    %v1946 = vsel %vm1945, %v1937, %v1942
    %v1947 = vmul.f32 %v1913, %v1936
    %v1948 = vmul.f32 %v1914, %v1946
    %v1949 = vmul.f32 %v1947, %v1013
    %v1950 = vmul.f32 %v1948, %v1013
    %v1951 = vadd.f32 %v1949, %v1016
    %v1952 = vadd.f32 %v1950, %v1016
    %v1954 = vsel %vm179, %v1951, 0
    %v1957 = vsel %vm179, %v1952, 0
    %1959 = vmatpush.msra.mxu0 0.0
    %1960 = vmatpush.msra.mxu0 0.0
    %1961 = vmatpush.msra.mxu0 0.0
    %1962 = vmatpush.msra.mxu0 0.0
    %1963 = vmatpush.msra.mxu0 0.0
    %1964 = vmatpush.msra.mxu0 0.0
    %1965 = vmatpush.msra.mxu0 0.0
    %1966 = vmatpush.msra.mxu0 0.0
    %1967 = vmatpush.msra.mxu0 0.0
    %1968 = vmatpush.msra.mxu0 0.0
    %1969 = vmatpush.msra.mxu0 0.0
    %1970 = vmatpush.msra.mxu0 0.0
    %1971 = vmatpush.msra.mxu0 %v154
    %1972 = vmatpush.msra.mxu0 %v153
    %1973 = vmatpush.msra.mxu0 %v152
    %1974 = vmatpush.msra.mxu0 %v151
    %1975 = vmatmul.f32.gmra.mxu0 %v1954
    %v1976 = vpop.f32.mrf.mxu0
    %v1977 = vadd.f32 %v1019, %v1976
    %1978 = vmatmul.f32.gmra.mxu0 %v1957
    %v1979 = vpop.f32.mrf.mxu0
    %v1980 = vadd.f32 %v1019, %v1979
    %1981 = vdwg.mxu0
    %v1982 = vmul.f32 %v1977, 0.5
    %v1983 = vmul.f32 %v1980, 0.5
    %v1984 = vmul.f32 %v1977, 0.044715
    %v1985 = vmul.f32 %v1980, 0.044715
    %v1986 = vmul.f32 %v1984, %v1977
    %v1987 = vmul.f32 %v1985, %v1980
    %v1988 = vmul.f32 %v1986, %v1977
    %v1989 = vmul.f32 %v1987, %v1980
    %v1990 = vadd.f32 %v1977, %v1988
    %v1991 = vadd.f32 %v1980, %v1989
    %v1992 = vmul.f32 %v1990, 0.7978846
    %v1993 = vmul.f32 %v1991, 0.7978846
    %v1994 = vtanh.pop %v1992
    %v1995 = vtanh.pop %v1993
    %v1996 = vadd.f32 %v1994, 1.0
    %v1997 = vadd.f32 %v1995, 1.0
    %v1998 = vmul.f32 %v1982, %v1996
    %v1999 = vmul.f32 %v1983, %v1997
    %v2001 = vsel %vm1068, %v1998, 0
    %v2004 = vsel %vm1068, %v1999, 0
    %2006 = vmatpush.msra.mxu0 0.0
    %2007 = vmatpush.msra.mxu0 0.0
    %2008 = vmatpush.msra.mxu0 0.0
    %2009 = vmatpush.msra.mxu0 0.0
    %2010 = vmatpush.msra.mxu0 0.0
    %2011 = vmatpush.msra.mxu0 0.0
    %2012 = vmatpush.msra.mxu0 0.0
    %2013 = vmatpush.msra.mxu0 0.0
    %2014 = vmatpush.msra.mxu0 %v163
    %2015 = vmatpush.msra.mxu0 %v162
    %2016 = vmatpush.msra.mxu0 %v161
    %2017 = vmatpush.msra.mxu0 %v160
    %2018 = vmatpush.msra.mxu0 %v159
    %2019 = vmatpush.msra.mxu0 %v158
    %2020 = vmatpush.msra.mxu0 %v157
    %2021 = vmatpush.msra.mxu0 %v156
    %2022 = vmatmul.f32.gmra.mxu0 %v2001
    %v2023 = vpop.f32.mrf.mxu0
    %v2024 = vadd.f32 %v1067, %v2023
    %2025 = vmatmul.f32.gmra.mxu0 %v2004
    %v2026 = vpop.f32.mrf.mxu0
    %v2027 = vadd.f32 %v1067, %v2026
    %2028 = vdwg.mxu0
    %v2029 = vadd.f32 %v2024, %v1951
    %v2030 = vadd.f32 %v2027, %v1952
    %v2031 = vsel %vm179, %v2029, 0.0
    %2032 = vadd.xlane.f32.xlu0 %v2031
    %v2033 = vpop.xlane.xlu0 %2032
    %v2034 = vsel %vm179, %v2030, 0.0
    %2035 = vadd.xlane.f32.xlu0 %v2034
    %v2036 = vpop.xlane.xlu0 %2035
    %v2037 = vmul.f32 %v2033, %v974
    %v2038 = vmul.f32 %v2036, %v974
    %v2039 = vsub.f32 %v2029, %v2037
    %v2040 = vsub.f32 %v2030, %v2038
    %v2041 = vmul.f32 %v2039, %v2039
    %v2042 = vmul.f32 %v2040, %v2040
    %v2043 = vsel %vm179, %v2041, 0.0
    %2044 = vadd.xlane.f32.xlu0 %v2043
    %v2045 = vpop.xlane.xlu0 %2044
    %v2046 = vsel %vm179, %v2042, 0.0
    %2047 = vadd.xlane.f32.xlu0 %v2046
    %v2048 = vpop.xlane.xlu0 %2047
    %v2049 = vmul.f32 %v2045, %v974
    %v2050 = vmul.f32 %v2048, %v974
    %v2051 = vadd.f32 %v2049, 1e-12
    %v2052 = vadd.f32 %v2050, 1e-12
    %v2053 = vrsqrt.pop %v2051
    %v2054 = vmul.f32 %v2053, %v2051
    %v2055 = vmul.f32 %v2054, %v2053
    %v2056 = vmul.f32 0.5, %v2055
    %v2057 = vsub.f32 1.5, %v2056
    %v2058 = vmul.f32 %v2053, %v2057
    %vm2059 = vweird.f32 %v2051
    %vm2060 = vweird.f32 %v2053
    %vm2061 = vmor %vm2059, %vm2060
    %v2062 = vsel %vm2061, %v2053, %v2058
    %v2063 = vrsqrt.pop %v2052
    %v2064 = vmul.f32 %v2063, %v2052
    %v2065 = vmul.f32 %v2064, %v2063
    %v2066 = vmul.f32 0.5, %v2065
    %v2067 = vsub.f32 1.5, %v2066
    %v2068 = vmul.f32 %v2063, %v2067
    %vm2069 = vweird.f32 %v2052
    %vm2070 = vweird.f32 %v2063
    %vm2071 = vmor %vm2069, %vm2070
    %v2072 = vsel %vm2071, %v2063, %v2068
    %v2073 = vmul.f32 %v2039, %v2062
    %v2074 = vmul.f32 %v2040, %v2072
    %v2075 = vmul.f32 %v2073, %v1144
    %v2076 = vmul.f32 %v2074, %v1144
    %v2077 = vadd.f32 %v2075, %v1147
    %v2078 = vadd.f32 %v2076, %v1147
    %v2080 = vrot.slane %v2078, 7
    %vm2082 = vcmask 1040384
    %v2083 = vsel %vm2082, %v2077, %v2080
    %v2084 = vld [vmem:[%s4 + $0x90] sm:$0xff]
    %v2085 = vld [vmem:[%s4 + $0x98] sm:$0xff]
    %v2086 = vld [vmem:[%s4 + $0xa0] sm:$0xff]
    %v2087 = vld [vmem:[%s4 + $0xa8] sm:$0xff]
    %v2088 = vld [vmem:[%s4 + $0x120] sm:$0x1]
    %v2089 = vperm.slane %v2088, 0
    %v2091 = vsel %vm179, %v2083, 0
    %2093 = vmatpush.msra.mxu0 0.0
    %2094 = vmatpush.msra.mxu0 0.0
    %2095 = vmatpush.msra.mxu0 0.0
    %2096 = vmatpush.msra.mxu0 0.0
    %2097 = vmatpush.msra.mxu0 0.0
    %2098 = vmatpush.msra.mxu0 0.0
    %2099 = vmatpush.msra.mxu0 0.0
    %2100 = vmatpush.msra.mxu0 0.0
    %2101 = vmatpush.msra.mxu0 0.0
    %2102 = vmatpush.msra.mxu0 0.0
    %2103 = vmatpush.msra.mxu0 0.0
    %2104 = vmatpush.msra.mxu0 0.0
    %2105 = vmatpush.msra.mxu0 %v2087
    %2106 = vmatpush.msra.mxu0 %v2086
    %2107 = vmatpush.msra.mxu0 %v2085
    %2108 = vmatpush.msra.mxu0 %v2084
    %2109 = vmatmul.f32.gmra.mxu0 %v2091
    %v2110 = vpop.f32.mrf.mxu0
    %v2111 = vadd.f32 %v2089, %v2110
    %2112 = vdwg.mxu0
    %v2113 = vtanh.pop %v2111
    %v2114 = vld [vmem:[%s4 + $0xb0] sm:$0xff]
    %v2115 = vld [vmem:[%s4 + $0xb8] sm:$0xff]
    %v2116 = vld [vmem:[%s4 + $0xc0] sm:$0xff]
    %v2117 = vld [vmem:[%s4 + $0xc8] sm:$0xff]
    %v2118 = vld [vmem:[%s4 + $0x128] sm:$0x1]
    %v2119 = vperm.slane %v2118, 0
    %v2121 = vsel %vm179, %v2113, 0
    %2123 = vmatpush.msra.mxu0 0.0
    %2124 = vmatpush.msra.mxu0 0.0
    %2125 = vmatpush.msra.mxu0 0.0
    %2126 = vmatpush.msra.mxu0 0.0
    %2127 = vmatpush.msra.mxu0 0.0
    %2128 = vmatpush.msra.mxu0 0.0
    %2129 = vmatpush.msra.mxu0 0.0
    %2130 = vmatpush.msra.mxu0 0.0
    %2131 = vmatpush.msra.mxu0 0.0
    %2132 = vmatpush.msra.mxu0 0.0
    %2133 = vmatpush.msra.mxu0 0.0
    %2134 = vmatpush.msra.mxu0 0.0
    %2135 = vmatpush.msra.mxu0 %v2117
    %2136 = vmatpush.msra.mxu0 %v2116
    %2137 = vmatpush.msra.mxu0 %v2115
    %2138 = vmatpush.msra.mxu0 %v2114
    %2139 = vmatmul.f32.gmra.mxu0 %v2121
    %v2140 = vpop.f32.mrf.mxu0
    %v2141 = vadd.f32 %v2119, %v2140
    %2142 = vdwg.mxu0
    %vm2143 = vcmask 17408
    %2144 = vst.msk [vmem:[#allocation2] sm:$0x3] %vm2143, %v2141
    // Predicated region
    $region22: #{albert_regression_forward.1} parent=1 // pred_check
      _
    $region23: #{albert_regression_forward.1} parent=1 // pred_check_branch
      %2146 = sbr.rel (0) target = $region25
    $region24: #{albert_regression_forward.1} parent=1 // pred_region
      %2148 = vsyncadd [#allocation3], 0
      %s2150 = sshll.u32 [#allocation2], 4
      %s2151 = int_to_ptr.vmem [resolvable:$true] %s2150
      %s2152 = sshll.u32 %s5, 4
      %s2153 = int_to_ptr.hbm [resolvable:$true] %s2152
      %2155 = dma.vmem_to_hbm [thread:$0]  %s2151, 32, %s2153, [#allocation3]
    $region25: #{albert_regression_forward.1} parent=1 // pred_fallthru
      _
    // Predicated region
    $region26: #{albert_regression_forward.1} parent=1 // pred_check
      _
    $region27: #{albert_regression_forward.1} parent=1 // pred_check_branch
      %2157 = sbr.rel (0) target = $region29
    $region28: #{albert_regression_forward.1} parent=1 // pred_region
      %2159 = dma.done [#allocation3], 32
    $region29: #{albert_regression_forward.1} parent=1 // pred_fallthru
      _
    %2160 = vsyncpa [#allocation3], 1

</llo_original>
